<compile_context>
chip_gen: v7x
topology: tpu7x:2x2x1
jax: 0.10.0
libtpu: 0.0.40
codegen_flags: <defaults>
</compile_context>

<pallas_src>
import functools

import jax
import jax.numpy as jnp
from jax import lax
from jax.experimental import pallas as pl
from jax.experimental.pallas import tpu as pltpu


# ---------------------------------------------------------------------------
# Pallas kernel: prior projection + LSTM recurrence + output classifier.
# All weight refs are pre-transposed to (in_features, out_features).
# Layout is flat time-major: rows [t*Bp + b] for t in [0,S), b in [0,Bp).
# ---------------------------------------------------------------------------
def _lstm_model_kernel(emb_ref, prior_ref,
                       wpT_ref, wih_eT_ref, wih_pT_ref, whhT_ref, woutT_ref,
                       bias_ref, *rest, S, Bp, H, has_init):
    if has_init:
        h0c0_ref, out_ref, hc_ref, xg_buf, hs_buf = rest
    else:
        h0c0_ref = None
        out_ref, hc_ref, xg_buf, hs_buf = rest

    G = 4 * H

    # Noise projection (identity activation; its bias is folded into the gate
    # bias at init time) followed by the noise->gate matmul.  Both run once.
    proj = jnp.dot(prior_ref[...], wpT_ref[...],
                   preferred_element_type=jnp.float32)            # (Bp, P')
    proj_gates = (jnp.dot(proj, wih_pT_ref[...],
                          preferred_element_type=jnp.float32)
                  + bias_ref[:, :G])                              # (Bp, 4H)

    # Hoisted input-side gate matmul for the whole sequence, stored flat in
    # VMEM scratch so the serial loop only does tiny aligned row reads.
    xg_buf[...] = jnp.dot(emb_ref[...], wih_eT_ref[...],
                          preferred_element_type=jnp.float32)     # (S*Bp, 4H)

    whhT = whhT_ref[...]                                          # (H, 4H)

    if has_init:
        h0 = h0c0_ref[:, :H]
        c0 = h0c0_ref[:, H:]
    else:
        h0 = jnp.zeros((Bp, H), jnp.float32)
        c0 = jnp.zeros((Bp, H), jnp.float32)

    # Lane mask selecting the cell-candidate band (PyTorch gate order i,f,g,o).
    lane = lax.broadcasted_iota(jnp.int32, (Bp, G), 1)
    g_band = (lane >= 2 * H) & (lane < 3 * H)

    def step(t, carry):
        h, c = carry
        row = pl.multiple_of(t * Bp, Bp)
        gates = (xg_buf[pl.ds(row, Bp), :] + proj_gates
                 + jnp.dot(h, whhT, preferred_element_type=jnp.float32))
        # Fused activations: one sigmoid + one tanh over the full 4H lanes
        # (2 EUP pushes per step instead of 4), then band-select g.
        act = jnp.where(g_band, jnp.tanh(gates), jax.nn.sigmoid(gates))
        i = act[:, 0 * H:1 * H]
        f = act[:, 1 * H:2 * H]
        g = act[:, 2 * H:3 * H]
        o = act[:, 3 * H:4 * H]
        c = f * c + i * g
        h = o * jnp.tanh(c)
        hs_buf[pl.ds(row, Bp), :] = h
        return h, c

    h, c = lax.fori_loop(0, S, step, (h0, c0), unroll=True)

    # Single merged final-state output (Bp, 2H).
    hc_ref[...] = jnp.concatenate([h, c], axis=-1)

    # Hoisted output classifier (identity output activation), one flat slab:
    #   (S*Bp, H) @ (H, O) + b_out  ->  (S*Bp, O), no in-kernel reshape.
    out_ref[...] = (jnp.dot(hs_buf[...], woutT_ref[...],
                            preferred_element_type=jnp.float32)
                    + bias_ref[:, G:])


# ---------------------------------------------------------------------------
# Wrapper: batch padding, flat time-major embedding gather, pallas_call,
# un-padding / layout back to the PyTorch batch-first convention.
# ---------------------------------------------------------------------------
def model_forward(tokens, prior_samples, kparams, hidden_state=None):
    B, S = tokens.shape
    H = kparams["whhT"].shape[0]
    O = kparams["woutT"].shape[1]
    Bp = ((B + 7) // 8) * 8            # pad batch to full sublane tiles

    # Time-major, batch-padded token ids -> flat (S*Bp, E) embedding gather.
    # Padded rows use the padding token (embedding row is zero) and are
    # dropped after the kernel.
    tok_tm = jnp.zeros((S, Bp), tokens.dtype).at[:, :B].set(tokens.T)
    emb_flat = jnp.take(kparams["embedding"], tok_tm.reshape(-1), axis=0)

    prior_p = (jnp.zeros((Bp, prior_samples.shape[1]), jnp.float32)
               .at[:B].set(prior_samples.astype(jnp.float32)))

    has_init = hidden_state is not None
    operands = [emb_flat, prior_p,
                kparams["wpT"], kparams["wih_eT"], kparams["wih_pT"],
                kparams["whhT"], kparams["woutT"], kparams["bias"]]
    if has_init:
        h0, c0 = hidden_state
        h0c0 = (jnp.zeros((Bp, 2 * H), jnp.float32)
                .at[:B, :H].set(h0.reshape(B, H).astype(jnp.float32))
                .at[:B, H:].set(c0.reshape(B, H).astype(jnp.float32)))
        operands.append(h0c0)

    vmem = pl.BlockSpec(memory_space=pltpu.MemorySpace.VMEM)
    kernel = functools.partial(_lstm_model_kernel, S=S, Bp=Bp, H=H,
                               has_init=has_init)

    out_flat, hc = pl.pallas_call(
        kernel,
        in_specs=[vmem] * len(operands),
        out_specs=(vmem, vmem),
        out_shape=(jax.ShapeDtypeStruct((S * Bp, O), jnp.float32),
                   jax.ShapeDtypeStruct((Bp, 2 * H), jnp.float32)),
        scratch_shapes=[pltpu.VMEM((S * Bp, 4 * H), jnp.float32),   # x_gates
                        pltpu.VMEM((S * Bp, H), jnp.float32)],      # hidden states
    )(*operands)

    # Un-pad / re-layout outside the kernel (cheap XLA ops).
    logits = out_flat.reshape(S, Bp, O)[:, :B, :].transpose(1, 0, 2)  # (B,S,O)
    hT = hc[:B, :H]
    cT = hc[:B, H:]
    # Final hidden state in PyTorch LSTM convention: (num_layers * D, B, H)
    return logits, (hT[None], cT[None])


# ---------------------------------------------------------------------------
# Deterministic parameter construction (shapes follow _Model.__init__),
# PyTorch layouts — used by the pure-JAX reference.
# ---------------------------------------------------------------------------
def init_params(key, n_embeddings, embedding_dim, prior_sample_dim,
                lstm_input_dim, hidden_size, output_dim, padding_token_index=0):
    proj_dim = lstm_input_dim - embedding_dim
    ks = jax.random.split(key, 9)
    s = 0.1
    emb = s * jax.random.normal(ks[0], (n_embeddings, embedding_dim), jnp.float32)
    emb = emb.at[padding_token_index].set(0.0)                     # padding_idx
    w_proj = s * jax.random.normal(ks[1], (proj_dim, prior_sample_dim), jnp.float32)
    b_proj = s * jax.random.normal(ks[2], (1, proj_dim), jnp.float32)
    w_ih = s * jax.random.normal(ks[3], (4 * hidden_size, lstm_input_dim), jnp.float32)
    w_hh = s * jax.random.normal(ks[4], (4 * hidden_size, hidden_size), jnp.float32)
    b_ih = s * jax.random.normal(ks[5], (4 * hidden_size,), jnp.float32)
    b_hh = s * jax.random.normal(ks[6], (4 * hidden_size,), jnp.float32)
    w_out = s * jax.random.normal(ks[7], (output_dim, hidden_size), jnp.float32)
    b_out = s * jax.random.normal(ks[8], (1, output_dim), jnp.float32)
    return dict(
        embedding=emb,
        w_proj=w_proj, b_proj=b_proj,
        # split W_ih into token-embedding and noise-projection columns so the
        # kernel never concatenates inside the recurrence.
        w_ih_e=w_ih[:, :embedding_dim],
        w_ih_p=w_ih[:, embedding_dim:],
        w_hh=w_hh,
        b_gates=(b_ih + b_hh)[None, :],
        w_out=w_out, b_out=b_out,
    )


def pack_kernel_params(p):
    """One-time (init-time) repacking of params for the kernel:
    pre-transposed weights, projection bias folded through the noise->gate
    columns (valid for the Identity projection activation the module defaults
    to), and all biases concatenated into a single operand."""
    b_gates = p["b_gates"][0] + p["b_proj"][0] @ p["w_ih_p"].T     # (4H,)
    bias = jnp.concatenate([b_gates, p["b_out"][0]])[None, :]      # (1, 4H+O)
    return dict(
        embedding=p["embedding"],
        wpT=jnp.asarray(p["w_proj"].T),       # (P,  P')
        wih_eT=jnp.asarray(p["w_ih_e"].T),    # (E,  4H)
        wih_pT=jnp.asarray(p["w_ih_p"].T),    # (P', 4H)
        whhT=jnp.asarray(p["w_hh"].T),        # (H,  4H)
        woutT=jnp.asarray(p["w_out"].T),      # (H,  O)
        bias=bias,
    )


# ---------------------------------------------------------------------------
# Pure-JAX reference (mirrors the PyTorch forward) for verification
# ---------------------------------------------------------------------------
def reference_forward(tokens, prior_samples, params):
    emb = params["embedding"][tokens]                              # (B, S, E)
    B, S, _ = emb.shape
    H = params["w_hh"].shape[1]
    proj = prior_samples @ params["w_proj"].T + params["b_proj"][0]
    w_ih = jnp.concatenate([params["w_ih_e"], params["w_ih_p"]], axis=1)
    x = jnp.concatenate(
        [emb, jnp.broadcast_to(proj[:, None, :], (B, S, proj.shape[-1]))], axis=-1)
    h = jnp.zeros((B, H), jnp.float32)
    c = jnp.zeros((B, H), jnp.float32)
    outs = []
    for t in range(S):
        gates = x[:, t] @ w_ih.T + h @ params["w_hh"].T + params["b_gates"][0]
        i = jax.nn.sigmoid(gates[:, :H])
        f = jax.nn.sigmoid(gates[:, H:2 * H])
        g = jnp.tanh(gates[:, 2 * H:3 * H])
        o = jax.nn.sigmoid(gates[:, 3 * H:])
        c = f * c + i * g
        h = o * jnp.tanh(c)
        outs.append(h @ params["w_out"].T + params["b_out"][0])
    return jnp.stack(outs, axis=1), (h[None], c[None])


if __name__ == "__main__":
    # Small, module-consistent shapes.
    B, S = 2, 8
    n_embeddings, embedding_dim = 16, 8
    prior_sample_dim = 6
    lstm_input_dim = 16            # -> projection_dim = 8
    hidden_size = 32
    output_dim = 16

    key = jax.random.PRNGKey(0)
    kp, kt, kn = jax.random.split(key, 3)
    params = init_params(kp, n_embeddings, embedding_dim, prior_sample_dim,
                         lstm_input_dim, hidden_size, output_dim)
    kparams = pack_kernel_params(params)          # one-time repack for kernel

    tokens = jax.random.randint(kt, (B, S), 0, n_embeddings, dtype=jnp.int32)
    prior_samples = jax.random.normal(kn, (B, prior_sample_dim), jnp.float32)

    logits, (h_n, c_n) = model_forward(tokens, prior_samples, kparams)
    logits = jax.block_until_ready(logits)
    h_n = jax.block_until_ready(h_n)
    c_n = jax.block_until_ready(c_n)

    ref_logits, (ref_h, ref_c) = reference_forward(tokens, prior_samples, params)
    assert logits.shape == (B, S, output_dim)
    assert h_n.shape == (1, B, hidden_size) and c_n.shape == (1, B, hidden_size)
    assert jnp.allclose(logits, ref_logits, atol=1e-5, rtol=1e-5)
    assert jnp.allclose(h_n, ref_h, atol=1e-5, rtol=1e-5)
    assert jnp.allclose(c_n, ref_c, atol=1e-5, rtol=1e-5)

    print("KERNEL_OK")
</pallas_src>

<mosaic_0001>
module attributes {stable_mosaic.version = 11 : i64} {
  func.func @_lstm_model_kernel(%arg0: memref<64x8xf32, #tpu.memory_space<vmem>>, %arg1: memref<8x6xf32, #tpu.memory_space<vmem>>, %arg2: memref<6x8xf32, #tpu.memory_space<vmem>>, %arg3: memref<8x128xf32, #tpu.memory_space<vmem>>, %arg4: memref<8x128xf32, #tpu.memory_space<vmem>>, %arg5: memref<32x128xf32, #tpu.memory_space<vmem>>, %arg6: memref<32x16xf32, #tpu.memory_space<vmem>>, %arg7: memref<1x144xf32, #tpu.memory_space<vmem>>, %arg8: memref<64x16xf32, #tpu.memory_space<vmem>>, %arg9: memref<8x64xf32, #tpu.memory_space<vmem>>, %arg10: memref<64x128xf32, #tpu.memory_space<vmem>>, %arg11: memref<64x32xf32, #tpu.memory_space<vmem>>) attributes {dimension_semantics = [], scalar_prefetch = 0 : i64, scratch_operands = 2 : i64, tpu.core_type = #tpu.core_type<tc>} {
    %c0 = arith.constant 0 : index
    %c0_0 = arith.constant 0 : index
    %0 = vector.load %arg1[%c0, %c0_0] : memref<8x6xf32, #tpu.memory_space<vmem>>, vector<8x6xf32>
    %c0_1 = arith.constant 0 : index
    %c0_2 = arith.constant 0 : index
    %1 = vector.load %arg2[%c0_1, %c0_2] : memref<6x8xf32, #tpu.memory_space<vmem>>, vector<6x8xf32>
    %cst = arith.constant dense<0.000000e+00> : vector<8x8xf32>
    %2 = tpu.matmul %0, %1, %cst {dimension_numbers = #tpu.dot_dimension_numbers<[1], [0], [0], [1], [0, 0, 1, 1], [], []>} : vector<8x6xf32>, vector<6x8xf32>, vector<8x8xf32> -> vector<8x8xf32>
    %c0_3 = arith.constant 0 : index
    %c0_4 = arith.constant 0 : index
    %3 = vector.load %arg4[%c0_3, %c0_4] : memref<8x128xf32, #tpu.memory_space<vmem>>, vector<8x128xf32>
    %cst_5 = arith.constant dense<0.000000e+00> : vector<8x128xf32>
    %4 = tpu.matmul %2, %3, %cst_5 {dimension_numbers = #tpu.dot_dimension_numbers<[1], [0], [0], [1], [0, 0, 1, 1], [], []>} : vector<8x8xf32>, vector<8x128xf32>, vector<8x128xf32> -> vector<8x128xf32>
    %c0_6 = arith.constant 0 : index
    %c0_7 = arith.constant 0 : index
    %5 = vector.load %arg7[%c0_6, %c0_7] : memref<1x144xf32, #tpu.memory_space<vmem>>, vector<1x128xf32>
    %6 = vector.broadcast %5 : vector<1x128xf32> to vector<8x128xf32>
    %7 = arith.addf %4, %6 : vector<8x128xf32>
    %c0_8 = arith.constant 0 : index
    %c0_9 = arith.constant 0 : index
    %8 = vector.load %arg0[%c0_8, %c0_9] : memref<64x8xf32, #tpu.memory_space<vmem>>, vector<64x8xf32>
    %c0_10 = arith.constant 0 : index
    %c0_11 = arith.constant 0 : index
    %9 = vector.load %arg3[%c0_10, %c0_11] : memref<8x128xf32, #tpu.memory_space<vmem>>, vector<8x128xf32>
    %cst_12 = arith.constant dense<0.000000e+00> : vector<64x128xf32>
    %10 = tpu.matmul %8, %9, %cst_12 {dimension_numbers = #tpu.dot_dimension_numbers<[1], [0], [0], [1], [0, 0, 1, 1], [], []>} : vector<64x8xf32>, vector<8x128xf32>, vector<64x128xf32> -> vector<64x128xf32>
    %c0_13 = arith.constant 0 : index
    %c0_14 = arith.constant 0 : index
    %11 = vector.load %arg10[%c0_13, %c0_14] : memref<64x128xf32, #tpu.memory_space<vmem>>, vector<64x128xf32>
    tpu.vector_store %arg10[%c0_13, %c0_14], %10 {strides = array<i32>} : memref<64x128xf32, #tpu.memory_space<vmem>>, vector<64x128xf32>,
    %c0_15 = arith.constant 0 : index
    %c0_16 = arith.constant 0 : index
    %12 = vector.load %arg5[%c0_15, %c0_16] : memref<32x128xf32, #tpu.memory_space<vmem>>, vector<32x128xf32>
    %cst_17 = arith.constant 0.000000e+00 : f32
    %13 = vector.broadcast %cst_17 : f32 to vector<8x32xf32>
    %cst_18 = arith.constant 0.000000e+00 : f32
    %14 = vector.broadcast %cst_18 : f32 to vector<8x32xf32>
    %15 = tpu.iota {dimensions = array<i32: 1>} : vector<8x128xi32>
    %c64_i32 = arith.constant 64 : i32
    %16 = vector.broadcast %c64_i32 : i32 to vector<8x128xi32>
    %17 = arith.cmpi sge, %15, %16 : vector<8x128xi32>
    %c96_i32 = arith.constant 96 : i32
    %18 = vector.broadcast %c96_i32 : i32 to vector<8x128xi32>
    %19 = arith.cmpi slt, %15, %18 : vector<8x128xi32>
    %20 = arith.andi %17, %19 : vector<8x128xi1>
    %c0_i32 = arith.constant 0 : i32
    %c8_i32 = arith.constant 8 : i32
    %21 = arith.muli %c0_i32, %c8_i32 : i32
    %22 = tpu.assume_multiple %21, 8 : i32
    %23 = arith.index_cast %22 : i32 to index
    %c0_19 = arith.constant 0 : index
    %24 = vector.load %arg10[%23, %c0_19] : memref<64x128xf32, #tpu.memory_space<vmem>>, vector<8x128xf32>
    %25 = arith.addf %24, %7 : vector<8x128xf32>
    %cst_20 = arith.constant dense<0.000000e+00> : vector<8x128xf32>
    %26 = tpu.matmul %13, %12, %cst_20 {dimension_numbers = #tpu.dot_dimension_numbers<[1], [0], [0], [1], [0, 0, 1, 1], [], []>} : vector<8x32xf32>, vector<32x128xf32>, vector<8x128xf32> -> vector<8x128xf32>
    %27 = arith.addf %25, %26 : vector<8x128xf32>
    %28 = math.tanh %27 : vector<8x128xf32>
    %29 = arith.negf %27 : vector<8x128xf32>
    %30 = math.exp %29 : vector<8x128xf32>
    %cst_21 = arith.constant 1.000000e+00 : f32
    %31 = vector.broadcast %cst_21 : f32 to vector<8x128xf32>
    %32 = arith.addf %31, %30 : vector<8x128xf32>
    %33 = arith.divf %31, %32 : vector<8x128xf32>
    %34 = arith.select %20, %28, %33 : vector<8x128xi1>, vector<8x128xf32>
    %35 = vector.extract_strided_slice %34 {offsets = [0, 0], sizes = [8, 32], strides = [1, 1]} : vector<8x128xf32> to vector<8x32xf32>
    %36 = vector.extract_strided_slice %34 {offsets = [0, 32], sizes = [8, 32], strides = [1, 1]} : vector<8x128xf32> to vector<8x32xf32>
    %37 = vector.extract_strided_slice %34 {offsets = [0, 64], sizes = [8, 32], strides = [1, 1]} : vector<8x128xf32> to vector<8x32xf32>
    %38 = vector.extract_strided_slice %34 {offsets = [0, 96], sizes = [8, 32], strides = [1, 1]} : vector<8x128xf32> to vector<8x32xf32>
    %39 = arith.mulf %36, %14 : vector<8x32xf32>
    %40 = arith.mulf %35, %37 : vector<8x32xf32>
    %41 = arith.addf %39, %40 : vector<8x32xf32>
    %42 = math.tanh %41 : vector<8x32xf32>
    %43 = arith.mulf %38, %42 : vector<8x32xf32>
    %44 = arith.index_cast %22 : i32 to index
    %c0_22 = arith.constant 0 : index
    %45 = vector.load %arg11[%44, %c0_22] : memref<64x32xf32, #tpu.memory_space<vmem>>, vector<8x32xf32>
    tpu.vector_store %arg11[%44, %c0_22], %43 {strides = array<i32>} : memref<64x32xf32, #tpu.memory_space<vmem>>, vector<8x32xf32>,
    %c1_i32 = arith.constant 1 : i32
    %c8_i32_23 = arith.constant 8 : i32
    %46 = arith.muli %c1_i32, %c8_i32_23 : i32
    %47 = tpu.assume_multiple %46, 8 : i32
    %48 = arith.index_cast %47 : i32 to index
    %c0_24 = arith.constant 0 : index
    %49 = vector.load %arg10[%48, %c0_24] : memref<64x128xf32, #tpu.memory_space<vmem>>, vector<8x128xf32>
    %50 = arith.addf %49, %7 : vector<8x128xf32>
    %cst_25 = arith.constant dense<0.000000e+00> : vector<8x128xf32>
    %51 = tpu.matmul %43, %12, %cst_25 {dimension_numbers = #tpu.dot_dimension_numbers<[1], [0], [0], [1], [0, 0, 1, 1], [], []>} : vector<8x32xf32>, vector<32x128xf32>, vector<8x128xf32> -> vector<8x128xf32>
    %52 = arith.addf %50, %51 : vector<8x128xf32>
    %53 = math.tanh %52 : vector<8x128xf32>
    %54 = arith.negf %52 : vector<8x128xf32>
    %55 = math.exp %54 : vector<8x128xf32>
    %cst_26 = arith.constant 1.000000e+00 : f32
    %56 = vector.broadcast %cst_26 : f32 to vector<8x128xf32>
    %57 = arith.addf %56, %55 : vector<8x128xf32>
    %58 = arith.divf %56, %57 : vector<8x128xf32>
    %59 = arith.select %20, %53, %58 : vector<8x128xi1>, vector<8x128xf32>
    %60 = vector.extract_strided_slice %59 {offsets = [0, 0], sizes = [8, 32], strides = [1, 1]} : vector<8x128xf32> to vector<8x32xf32>
    %61 = vector.extract_strided_slice %59 {offsets = [0, 32], sizes = [8, 32], strides = [1, 1]} : vector<8x128xf32> to vector<8x32xf32>
    %62 = vector.extract_strided_slice %59 {offsets = [0, 64], sizes = [8, 32], strides = [1, 1]} : vector<8x128xf32> to vector<8x32xf32>
    %63 = vector.extract_strided_slice %59 {offsets = [0, 96], sizes = [8, 32], strides = [1, 1]} : vector<8x128xf32> to vector<8x32xf32>
    %64 = arith.mulf %61, %41 : vector<8x32xf32>
    %65 = arith.mulf %60, %62 : vector<8x32xf32>
    %66 = arith.addf %64, %65 : vector<8x32xf32>
    %67 = math.tanh %66 : vector<8x32xf32>
    %68 = arith.mulf %63, %67 : vector<8x32xf32>
    %69 = arith.index_cast %47 : i32 to index
    %c0_27 = arith.constant 0 : index
    %70 = vector.load %arg11[%69, %c0_27] : memref<64x32xf32, #tpu.memory_space<vmem>>, vector<8x32xf32>
    tpu.vector_store %arg11[%69, %c0_27], %68 {strides = array<i32>} : memref<64x32xf32, #tpu.memory_space<vmem>>, vector<8x32xf32>,
    %c2_i32 = arith.constant 2 : i32
    %c8_i32_28 = arith.constant 8 : i32
    %71 = arith.muli %c2_i32, %c8_i32_28 : i32
    %72 = tpu.assume_multiple %71, 8 : i32
    %73 = arith.index_cast %72 : i32 to index
    %c0_29 = arith.constant 0 : index
    %74 = vector.load %arg10[%73, %c0_29] : memref<64x128xf32, #tpu.memory_space<vmem>>, vector<8x128xf32>
    %75 = arith.addf %74, %7 : vector<8x128xf32>
    %cst_30 = arith.constant dense<0.000000e+00> : vector<8x128xf32>
    %76 = tpu.matmul %68, %12, %cst_30 {dimension_numbers = #tpu.dot_dimension_numbers<[1], [0], [0], [1], [0, 0, 1, 1], [], []>} : vector<8x32xf32>, vector<32x128xf32>, vector<8x128xf32> -> vector<8x128xf32>
    %77 = arith.addf %75, %76 : vector<8x128xf32>
    %78 = math.tanh %77 : vector<8x128xf32>
    %79 = arith.negf %77 : vector<8x128xf32>
    %80 = math.exp %79 : vector<8x128xf32>
    %cst_31 = arith.constant 1.000000e+00 : f32
    %81 = vector.broadcast %cst_31 : f32 to vector<8x128xf32>
    %82 = arith.addf %81, %80 : vector<8x128xf32>
    %83 = arith.divf %81, %82 : vector<8x128xf32>
    %84 = arith.select %20, %78, %83 : vector<8x128xi1>, vector<8x128xf32>
    %85 = vector.extract_strided_slice %84 {offsets = [0, 0], sizes = [8, 32], strides = [1, 1]} : vector<8x128xf32> to vector<8x32xf32>
    %86 = vector.extract_strided_slice %84 {offsets = [0, 32], sizes = [8, 32], strides = [1, 1]} : vector<8x128xf32> to vector<8x32xf32>
    %87 = vector.extract_strided_slice %84 {offsets = [0, 64], sizes = [8, 32], strides = [1, 1]} : vector<8x128xf32> to vector<8x32xf32>
    %88 = vector.extract_strided_slice %84 {offsets = [0, 96], sizes = [8, 32], strides = [1, 1]} : vector<8x128xf32> to vector<8x32xf32>
    %89 = arith.mulf %86, %66 : vector<8x32xf32>
    %90 = arith.mulf %85, %87 : vector<8x32xf32>
    %91 = arith.addf %89, %90 : vector<8x32xf32>
    %92 = math.tanh %91 : vector<8x32xf32>
    %93 = arith.mulf %88, %92 : vector<8x32xf32>
    %94 = arith.index_cast %72 : i32 to index
    %c0_32 = arith.constant 0 : index
    %95 = vector.load %arg11[%94, %c0_32] : memref<64x32xf32, #tpu.memory_space<vmem>>, vector<8x32xf32>
    tpu.vector_store %arg11[%94, %c0_32], %93 {strides = array<i32>} : memref<64x32xf32, #tpu.memory_space<vmem>>, vector<8x32xf32>,
    %c3_i32 = arith.constant 3 : i32
    %c8_i32_33 = arith.constant 8 : i32
    %96 = arith.muli %c3_i32, %c8_i32_33 : i32
    %97 = tpu.assume_multiple %96, 8 : i32
    %98 = arith.index_cast %97 : i32 to index
    %c0_34 = arith.constant 0 : index
    %99 = vector.load %arg10[%98, %c0_34] : memref<64x128xf32, #tpu.memory_space<vmem>>, vector<8x128xf32>
    %100 = arith.addf %99, %7 : vector<8x128xf32>
    %cst_35 = arith.constant dense<0.000000e+00> : vector<8x128xf32>
    %101 = tpu.matmul %93, %12, %cst_35 {dimension_numbers = #tpu.dot_dimension_numbers<[1], [0], [0], [1], [0, 0, 1, 1], [], []>} : vector<8x32xf32>, vector<32x128xf32>, vector<8x128xf32> -> vector<8x128xf32>
    %102 = arith.addf %100, %101 : vector<8x128xf32>
    %103 = math.tanh %102 : vector<8x128xf32>
    %104 = arith.negf %102 : vector<8x128xf32>
    %105 = math.exp %104 : vector<8x128xf32>
    %cst_36 = arith.constant 1.000000e+00 : f32
    %106 = vector.broadcast %cst_36 : f32 to vector<8x128xf32>
    %107 = arith.addf %106, %105 : vector<8x128xf32>
    %108 = arith.divf %106, %107 : vector<8x128xf32>
    %109 = arith.select %20, %103, %108 : vector<8x128xi1>, vector<8x128xf32>
    %110 = vector.extract_strided_slice %109 {offsets = [0, 0], sizes = [8, 32], strides = [1, 1]} : vector<8x128xf32> to vector<8x32xf32>
    %111 = vector.extract_strided_slice %109 {offsets = [0, 32], sizes = [8, 32], strides = [1, 1]} : vector<8x128xf32> to vector<8x32xf32>
    %112 = vector.extract_strided_slice %109 {offsets = [0, 64], sizes = [8, 32], strides = [1, 1]} : vector<8x128xf32> to vector<8x32xf32>
    %113 = vector.extract_strided_slice %109 {offsets = [0, 96], sizes = [8, 32], strides = [1, 1]} : vector<8x128xf32> to vector<8x32xf32>
    %114 = arith.mulf %111, %91 : vector<8x32xf32>
    %115 = arith.mulf %110, %112 : vector<8x32xf32>
    %116 = arith.addf %114, %115 : vector<8x32xf32>
    %117 = math.tanh %116 : vector<8x32xf32>
    %118 = arith.mulf %113, %117 : vector<8x32xf32>
    %119 = arith.index_cast %97 : i32 to index
    %c0_37 = arith.constant 0 : index
    %120 = vector.load %arg11[%119, %c0_37] : memref<64x32xf32, #tpu.memory_space<vmem>>, vector<8x32xf32>
    tpu.vector_store %arg11[%119, %c0_37], %118 {strides = array<i32>} : memref<64x32xf32, #tpu.memory_space<vmem>>, vector<8x32xf32>,
    %c4_i32 = arith.constant 4 : i32
    %c8_i32_38 = arith.constant 8 : i32
    %121 = arith.muli %c4_i32, %c8_i32_38 : i32
    %122 = tpu.assume_multiple %121, 8 : i32
    %123 = arith.index_cast %122 : i32 to index
    %c0_39 = arith.constant 0 : index
    %124 = vector.load %arg10[%123, %c0_39] : memref<64x128xf32, #tpu.memory_space<vmem>>, vector<8x128xf32>
    %125 = arith.addf %124, %7 : vector<8x128xf32>
    %cst_40 = arith.constant dense<0.000000e+00> : vector<8x128xf32>
    %126 = tpu.matmul %118, %12, %cst_40 {dimension_numbers = #tpu.dot_dimension_numbers<[1], [0], [0], [1], [0, 0, 1, 1], [], []>} : vector<8x32xf32>, vector<32x128xf32>, vector<8x128xf32> -> vector<8x128xf32>
    %127 = arith.addf %125, %126 : vector<8x128xf32>
    %128 = math.tanh %127 : vector<8x128xf32>
    %129 = arith.negf %127 : vector<8x128xf32>
    %130 = math.exp %129 : vector<8x128xf32>
    %cst_41 = arith.constant 1.000000e+00 : f32
    %131 = vector.broadcast %cst_41 : f32 to vector<8x128xf32>
    %132 = arith.addf %131, %130 : vector<8x128xf32>
    %133 = arith.divf %131, %132 : vector<8x128xf32>
    %134 = arith.select %20, %128, %133 : vector<8x128xi1>, vector<8x128xf32>
    %135 = vector.extract_strided_slice %134 {offsets = [0, 0], sizes = [8, 32], strides = [1, 1]} : vector<8x128xf32> to vector<8x32xf32>
    %136 = vector.extract_strided_slice %134 {offsets = [0, 32], sizes = [8, 32], strides = [1, 1]} : vector<8x128xf32> to vector<8x32xf32>
    %137 = vector.extract_strided_slice %134 {offsets = [0, 64], sizes = [8, 32], strides = [1, 1]} : vector<8x128xf32> to vector<8x32xf32>
    %138 = vector.extract_strided_slice %134 {offsets = [0, 96], sizes = [8, 32], strides = [1, 1]} : vector<8x128xf32> to vector<8x32xf32>
    %139 = arith.mulf %136, %116 : vector<8x32xf32>
    %140 = arith.mulf %135, %137 : vector<8x32xf32>
    %141 = arith.addf %139, %140 : vector<8x32xf32>
    %142 = math.tanh %141 : vector<8x32xf32>
    %143 = arith.mulf %138, %142 : vector<8x32xf32>
    %144 = arith.index_cast %122 : i32 to index
    %c0_42 = arith.constant 0 : index
    %145 = vector.load %arg11[%144, %c0_42] : memref<64x32xf32, #tpu.memory_space<vmem>>, vector<8x32xf32>
    tpu.vector_store %arg11[%144, %c0_42], %143 {strides = array<i32>} : memref<64x32xf32, #tpu.memory_space<vmem>>, vector<8x32xf32>,
    %c5_i32 = arith.constant 5 : i32
    %c8_i32_43 = arith.constant 8 : i32
    %146 = arith.muli %c5_i32, %c8_i32_43 : i32
    %147 = tpu.assume_multiple %146, 8 : i32
    %148 = arith.index_cast %147 : i32 to index
    %c0_44 = arith.constant 0 : index
    %149 = vector.load %arg10[%148, %c0_44] : memref<64x128xf32, #tpu.memory_space<vmem>>, vector<8x128xf32>
    %150 = arith.addf %149, %7 : vector<8x128xf32>
    %cst_45 = arith.constant dense<0.000000e+00> : vector<8x128xf32>
    %151 = tpu.matmul %143, %12, %cst_45 {dimension_numbers = #tpu.dot_dimension_numbers<[1], [0], [0], [1], [0, 0, 1, 1], [], []>} : vector<8x32xf32>, vector<32x128xf32>, vector<8x128xf32> -> vector<8x128xf32>
    %152 = arith.addf %150, %151 : vector<8x128xf32>
    %153 = math.tanh %152 : vector<8x128xf32>
    %154 = arith.negf %152 : vector<8x128xf32>
    %155 = math.exp %154 : vector<8x128xf32>
    %cst_46 = arith.constant 1.000000e+00 : f32
    %156 = vector.broadcast %cst_46 : f32 to vector<8x128xf32>
    %157 = arith.addf %156, %155 : vector<8x128xf32>
    %158 = arith.divf %156, %157 : vector<8x128xf32>
    %159 = arith.select %20, %153, %158 : vector<8x128xi1>, vector<8x128xf32>
    %160 = vector.extract_strided_slice %159 {offsets = [0, 0], sizes = [8, 32], strides = [1, 1]} : vector<8x128xf32> to vector<8x32xf32>
    %161 = vector.extract_strided_slice %159 {offsets = [0, 32], sizes = [8, 32], strides = [1, 1]} : vector<8x128xf32> to vector<8x32xf32>
    %162 = vector.extract_strided_slice %159 {offsets = [0, 64], sizes = [8, 32], strides = [1, 1]} : vector<8x128xf32> to vector<8x32xf32>
    %163 = vector.extract_strided_slice %159 {offsets = [0, 96], sizes = [8, 32], strides = [1, 1]} : vector<8x128xf32> to vector<8x32xf32>
    %164 = arith.mulf %161, %141 : vector<8x32xf32>
    %165 = arith.mulf %160, %162 : vector<8x32xf32>
    %166 = arith.addf %164, %165 : vector<8x32xf32>
    %167 = math.tanh %166 : vector<8x32xf32>
    %168 = arith.mulf %163, %167 : vector<8x32xf32>
    %169 = arith.index_cast %147 : i32 to index
    %c0_47 = arith.constant 0 : index
    %170 = vector.load %arg11[%169, %c0_47] : memref<64x32xf32, #tpu.memory_space<vmem>>, vector<8x32xf32>
    tpu.vector_store %arg11[%169, %c0_47], %168 {strides = array<i32>} : memref<64x32xf32, #tpu.memory_space<vmem>>, vector<8x32xf32>,
    %c6_i32 = arith.constant 6 : i32
    %c8_i32_48 = arith.constant 8 : i32
    %171 = arith.muli %c6_i32, %c8_i32_48 : i32
    %172 = tpu.assume_multiple %171, 8 : i32
    %173 = arith.index_cast %172 : i32 to index
    %c0_49 = arith.constant 0 : index
    %174 = vector.load %arg10[%173, %c0_49] : memref<64x128xf32, #tpu.memory_space<vmem>>, vector<8x128xf32>
    %175 = arith.addf %174, %7 : vector<8x128xf32>
    %cst_50 = arith.constant dense<0.000000e+00> : vector<8x128xf32>
    %176 = tpu.matmul %168, %12, %cst_50 {dimension_numbers = #tpu.dot_dimension_numbers<[1], [0], [0], [1], [0, 0, 1, 1], [], []>} : vector<8x32xf32>, vector<32x128xf32>, vector<8x128xf32> -> vector<8x128xf32>
    %177 = arith.addf %175, %176 : vector<8x128xf32>
    %178 = math.tanh %177 : vector<8x128xf32>
    %179 = arith.negf %177 : vector<8x128xf32>
    %180 = math.exp %179 : vector<8x128xf32>
    %cst_51 = arith.constant 1.000000e+00 : f32
    %181 = vector.broadcast %cst_51 : f32 to vector<8x128xf32>
    %182 = arith.addf %181, %180 : vector<8x128xf32>
    %183 = arith.divf %181, %182 : vector<8x128xf32>
    %184 = arith.select %20, %178, %183 : vector<8x128xi1>, vector<8x128xf32>
    %185 = vector.extract_strided_slice %184 {offsets = [0, 0], sizes = [8, 32], strides = [1, 1]} : vector<8x128xf32> to vector<8x32xf32>
    %186 = vector.extract_strided_slice %184 {offsets = [0, 32], sizes = [8, 32], strides = [1, 1]} : vector<8x128xf32> to vector<8x32xf32>
    %187 = vector.extract_strided_slice %184 {offsets = [0, 64], sizes = [8, 32], strides = [1, 1]} : vector<8x128xf32> to vector<8x32xf32>
    %188 = vector.extract_strided_slice %184 {offsets = [0, 96], sizes = [8, 32], strides = [1, 1]} : vector<8x128xf32> to vector<8x32xf32>
    %189 = arith.mulf %186, %166 : vector<8x32xf32>
    %190 = arith.mulf %185, %187 : vector<8x32xf32>
    %191 = arith.addf %189, %190 : vector<8x32xf32>
    %192 = math.tanh %191 : vector<8x32xf32>
    %193 = arith.mulf %188, %192 : vector<8x32xf32>
    %194 = arith.index_cast %172 : i32 to index
    %c0_52 = arith.constant 0 : index
    %195 = vector.load %arg11[%194, %c0_52] : memref<64x32xf32, #tpu.memory_space<vmem>>, vector<8x32xf32>
    tpu.vector_store %arg11[%194, %c0_52], %193 {strides = array<i32>} : memref<64x32xf32, #tpu.memory_space<vmem>>, vector<8x32xf32>,
    %c7_i32 = arith.constant 7 : i32
    %c8_i32_53 = arith.constant 8 : i32
    %196 = arith.muli %c7_i32, %c8_i32_53 : i32
    %197 = tpu.assume_multiple %196, 8 : i32
    %198 = arith.index_cast %197 : i32 to index
    %c0_54 = arith.constant 0 : index
    %199 = vector.load %arg10[%198, %c0_54] : memref<64x128xf32, #tpu.memory_space<vmem>>, vector<8x128xf32>
    %200 = arith.addf %199, %7 : vector<8x128xf32>
    %cst_55 = arith.constant dense<0.000000e+00> : vector<8x128xf32>
    %201 = tpu.matmul %193, %12, %cst_55 {dimension_numbers = #tpu.dot_dimension_numbers<[1], [0], [0], [1], [0, 0, 1, 1], [], []>} : vector<8x32xf32>, vector<32x128xf32>, vector<8x128xf32> -> vector<8x128xf32>
    %202 = arith.addf %200, %201 : vector<8x128xf32>
    %203 = math.tanh %202 : vector<8x128xf32>
    %204 = arith.negf %202 : vector<8x128xf32>
    %205 = math.exp %204 : vector<8x128xf32>
    %cst_56 = arith.constant 1.000000e+00 : f32
    %206 = vector.broadcast %cst_56 : f32 to vector<8x128xf32>
    %207 = arith.addf %206, %205 : vector<8x128xf32>
    %208 = arith.divf %206, %207 : vector<8x128xf32>
    %209 = arith.select %20, %203, %208 : vector<8x128xi1>, vector<8x128xf32>
    %210 = vector.extract_strided_slice %209 {offsets = [0, 0], sizes = [8, 32], strides = [1, 1]} : vector<8x128xf32> to vector<8x32xf32>
    %211 = vector.extract_strided_slice %209 {offsets = [0, 32], sizes = [8, 32], strides = [1, 1]} : vector<8x128xf32> to vector<8x32xf32>
    %212 = vector.extract_strided_slice %209 {offsets = [0, 64], sizes = [8, 32], strides = [1, 1]} : vector<8x128xf32> to vector<8x32xf32>
    %213 = vector.extract_strided_slice %209 {offsets = [0, 96], sizes = [8, 32], strides = [1, 1]} : vector<8x128xf32> to vector<8x32xf32>
    %214 = arith.mulf %211, %191 : vector<8x32xf32>
    %215 = arith.mulf %210, %212 : vector<8x32xf32>
    %216 = arith.addf %214, %215 : vector<8x32xf32>
    %217 = math.tanh %216 : vector<8x32xf32>
    %218 = arith.mulf %213, %217 : vector<8x32xf32>
    %219 = arith.index_cast %197 : i32 to index
    %c0_57 = arith.constant 0 : index
    %220 = vector.load %arg11[%219, %c0_57] : memref<64x32xf32, #tpu.memory_space<vmem>>, vector<8x32xf32>
    tpu.vector_store %arg11[%219, %c0_57], %218 {strides = array<i32>} : memref<64x32xf32, #tpu.memory_space<vmem>>, vector<8x32xf32>,
    %c8_i32_58 = arith.constant 8 : i32
    %221 = tpu.concatenate %218, %216 in 1 : vector<8x32xf32>, vector<8x32xf32> -> vector<8x64xf32>
    %c0_59 = arith.constant 0 : index
    %c0_60 = arith.constant 0 : index
    %222 = vector.load %arg9[%c0_59, %c0_60] : memref<8x64xf32, #tpu.memory_space<vmem>>, vector<8x64xf32>
    tpu.vector_store %arg9[%c0_59, %c0_60], %221 {strides = array<i32>} : memref<8x64xf32, #tpu.memory_space<vmem>>, vector<8x64xf32>,
    %c0_61 = arith.constant 0 : index
    %c0_62 = arith.constant 0 : index
    %223 = vector.load %arg11[%c0_61, %c0_62] : memref<64x32xf32, #tpu.memory_space<vmem>>, vector<64x32xf32>
    %c0_63 = arith.constant 0 : index
    %c0_64 = arith.constant 0 : index
    %224 = vector.load %arg6[%c0_63, %c0_64] : memref<32x16xf32, #tpu.memory_space<vmem>>, vector<32x16xf32>
    %cst_65 = arith.constant dense<0.000000e+00> : vector<64x16xf32>
    %225 = tpu.matmul %223, %224, %cst_65 {dimension_numbers = #tpu.dot_dimension_numbers<[1], [0], [0], [1], [0, 0, 1, 1], [], []>} : vector<64x32xf32>, vector<32x16xf32>, vector<64x16xf32> -> vector<64x16xf32>
    %c0_66 = arith.constant 0 : index
    %c128 = arith.constant 128 : index
    %226 = vector.load %arg7[%c0_66, %c128] : memref<1x144xf32, #tpu.memory_space<vmem>>, vector<1x16xf32>
    %227 = vector.broadcast %226 : vector<1x16xf32> to vector<64x16xf32>
    %228 = arith.addf %225, %227 : vector<64x16xf32>
    %c0_67 = arith.constant 0 : index
    %c0_68 = arith.constant 0 : index
    %229 = vector.load %arg8[%c0_67, %c0_68] : memref<64x16xf32, #tpu.memory_space<vmem>>, vector<64x16xf32>
    tpu.vector_store %arg8[%c0_67, %c0_68], %228 {strides = array<i32>} : memref<64x16xf32, #tpu.memory_space<vmem>>, vector<64x16xf32>,
    return
  }
}

</mosaic_0001>

<llo_original>
// kernel: tpu_custom_call.1
$region0: #{tpu_custom_call.1}
  #allocation0 [shape = 'u32[]', space=smem, size = 0x4, offset = 0x4, fixed_abs, tag = 'smem constant byte address 0x4 - core index']
  #allocation1 [shape = 'u32[144,128]{1,0:T(1,128)}', space=vmem, size = 0x12000, scoped, tag = 'internal scratch']
  #allocation2 [shape = 'f32[64,128]{1,0:T(8,128)}', space=vmem, size = 0x8000, scoped, tag = 'scratch operand']
  #allocation3 [shape = 'f32[64,32]{1,0:T(8,128)}', space=vmem, size = 0x8000, scoped, tag = 'scratch operand']
  %s0 = inlined_call_operand.vmem [shape: f32[64,8], index: 0, kind: input, shape index: {}]
  %s1 = inlined_call_operand.vmem [shape: f32[8,6], index: 1, kind: input, shape index: {}]
  %s2 = inlined_call_operand.vmem [shape: f32[6,8], index: 2, kind: input, shape index: {}]
  %s3 = inlined_call_operand.vmem [shape: f32[8,128], index: 3, kind: input, shape index: {}]
  %s4 = inlined_call_operand.vmem [shape: f32[8,128], index: 4, kind: input, shape index: {}]
  %s5 = inlined_call_operand.vmem [shape: f32[32,128], index: 5, kind: input, shape index: {}]
  %s6 = inlined_call_operand.vmem [shape: f32[32,16], index: 6, kind: input, shape index: {}]
  %s7 = inlined_call_operand.vmem [shape: f32[1,144], index: 7, kind: input, shape index: {}]
  %s8 = inlined_call_operand.vmem [shape: f32[64,16], index: 8, kind: output, shape index: {0}]
  %s9 = inlined_call_operand.hbm [shape: f32[8,64], index: 9, kind: output, shape index: {1}]
  %10 = xla_tuple %s8, %s9
  %s11 = sld [smem:[#allocation0]]
  $region50: #{tpu_custom_call.1} parent=0
    _
  %s13 = ssub.s32 1, %s11
  %s14 = scalar_select 0, %s13, %s11
  $region1: #{tpu_custom_call.1} parent=0
    #allocation4 [shape = 'u8[4096]{0}', space=vmem, size = 0x1000, scoped, tag = 'output window, operand 1, single buffered']
    #allocation5 [shape = 's32[1]{0}', space=sflag, size = 0x4, scoped, tag = 'scoped memory for tpu_custom_call.1']
    %15 = vsyncpa [#allocation5], 0
    // Predicated region
    $region2: #{tpu_custom_call.1} parent=1 // pred_check
      _
    $region3: #{tpu_custom_call.1} parent=1 // pred_check_branch
      %17 = sbr.rel (0) target = $region5
    $region4: #{tpu_custom_call.1} parent=1 // pred_region
      _
    $region5: #{tpu_custom_call.1} parent=1 // pred_fallthru
      _
    // Predicated region
    $region6: #{tpu_custom_call.1} parent=1 // pred_check
      _
    $region7: #{tpu_custom_call.1} parent=1 // pred_check_branch
      %19 = sbr.rel (0) target = $region9
    $region8: #{tpu_custom_call.1} parent=1 // pred_region
      _
    $region9: #{tpu_custom_call.1} parent=1 // pred_fallthru
      _
    // Predicated region
    $region10: #{tpu_custom_call.1} parent=1 // pred_check
      _
    $region11: #{tpu_custom_call.1} parent=1 // pred_check_branch
      %21 = sbr.rel (0) target = $region13
    $region12: #{tpu_custom_call.1} parent=1 // pred_region
      _
    $region13: #{tpu_custom_call.1} parent=1 // pred_fallthru
      _
    // Predicated region
    $region14: #{tpu_custom_call.1} parent=1 // pred_check
      _
    $region15: #{tpu_custom_call.1} parent=1 // pred_check_branch
      %23 = sbr.rel (0) target = $region17
    $region16: #{tpu_custom_call.1} parent=1 // pred_region
      _
    $region17: #{tpu_custom_call.1} parent=1 // pred_fallthru
      _
    // Predicated region
    $region18: #{tpu_custom_call.1} parent=1 // pred_check
      _
    $region19: #{tpu_custom_call.1} parent=1 // pred_check_branch
      %25 = sbr.rel (0) target = $region21
    $region20: #{tpu_custom_call.1} parent=1 // pred_region
      _
    $region21: #{tpu_custom_call.1} parent=1 // pred_fallthru
      _
    // Predicated region
    $region22: #{tpu_custom_call.1} parent=1 // pred_check
      _
    $region23: #{tpu_custom_call.1} parent=1 // pred_check_branch
      %27 = sbr.rel (0) target = $region25
    $region24: #{tpu_custom_call.1} parent=1 // pred_region
      _
    $region25: #{tpu_custom_call.1} parent=1 // pred_fallthru
      _
    // Predicated region
    $region26: #{tpu_custom_call.1} parent=1 // pred_check
      _
    $region27: #{tpu_custom_call.1} parent=1 // pred_check_branch
      %29 = sbr.rel (0) target = $region29
    $region28: #{tpu_custom_call.1} parent=1 // pred_region
      _
    $region29: #{tpu_custom_call.1} parent=1 // pred_fallthru
      _
    // Predicated region
    $region30: #{tpu_custom_call.1} parent=1 // pred_check
      _
    $region31: #{tpu_custom_call.1} parent=1 // pred_check_branch
      %31 = sbr.rel (0) target = $region33
    $region32: #{tpu_custom_call.1} parent=1 // pred_region
      _
    $region33: #{tpu_custom_call.1} parent=1 // pred_fallthru
      _
    %v32 = vld [vmem:[%s1] sm:$0xff]
    %v33 = vld [vmem:[%s2] sm:$0x3f]
    %vm34 = vcmask 48128
    %v36 = vsel %vm34, %v32, 0
    %vm38 = vcmask 1045504
    %v40 = vsel %vm38, %v33, 0
    %42 = vmatprep.subr.mxu0 0.0
    %43 = vmatpush1.msra.mxu0 %v40
    %44 = vmatprep.subr.mxu0 0.0
    %45 = vmatpush1.msra.mxu0 0.0
    %46 = vmatprep.subr.mxu0 0.0
    %47 = vmatpush1.msra.mxu0 0.0
    %48 = vmatprep.subr.mxu0 0.0
    %49 = vmatpush1.msra.mxu0 0.0
    %50 = vmatprep.subr.mxu0 0.0
    %51 = vmatpush1.msra.mxu0 0.0
    %52 = vmatprep.subr.mxu0 0.0
    %53 = vmatpush1.msra.mxu0 0.0
    %54 = vmatprep.subr.mxu0 0.0
    %55 = vmatpush1.msra.mxu0 0.0
    %56 = vmatprep.subr.mxu0 0.0
    %57 = vmatpush1.msra.mxu0 0.0
    %58 = vmatprep.subr.mxu0 0.0
    %59 = vmatpush1.msra.mxu0 0.0
    %60 = vmatprep.subr.mxu0 0.0
    %61 = vmatpush1.msra.mxu0 0.0
    %62 = vmatprep.subr.mxu0 0.0
    %63 = vmatpush1.msra.mxu0 0.0
    %64 = vmatprep.subr.mxu0 0.0
    %65 = vmatpush1.msra.mxu0 0.0
    %66 = vmatprep.subr.mxu0 0.0
    %67 = vmatpush1.msra.mxu0 0.0
    %68 = vmatprep.subr.mxu0 0.0
    %69 = vmatpush1.msra.mxu0 0.0
    %70 = vmatprep.subr.mxu0 0.0
    %71 = vmatpush1.msra.mxu0 0.0
    %72 = vmatprep.subr.mxu0 0.0
    %73 = vmatpush1.msra.mxu0 0.0
    %74 = vmatprep.subr.mxu0 0.0
    %75 = vmatpush1.msra.mxu0 0.0
    %76 = vmatprep.subr.mxu0 0.0
    %77 = vmatpush1.msra.mxu0 0.0
    %78 = vmatprep.subr.mxu0 0.0
    %79 = vmatpush1.msra.mxu0 0.0
    %80 = vmatprep.subr.mxu0 0.0
    %81 = vmatpush1.msra.mxu0 0.0
    %82 = vmatprep.subr.mxu0 0.0
    %83 = vmatpush1.msra.mxu0 0.0
    %84 = vmatprep.subr.mxu0 0.0
    %85 = vmatpush1.msra.mxu0 0.0
    %86 = vmatprep.subr.mxu0 0.0
    %87 = vmatpush1.msra.mxu0 0.0
    %88 = vmatprep.subr.mxu0 0.0
    %89 = vmatpush1.msra.mxu0 0.0
    %90 = vmatprep.subr.mxu0 0.0
    %91 = vmatpush1.msra.mxu0 0.0
    %92 = vmatprep.subr.mxu0 0.0
    %93 = vmatpush1.msra.mxu0 0.0
    %94 = vmatprep.subr.mxu0 0.0
    %95 = vmatpush1.msra.mxu0 0.0
    %96 = vmatprep.subr.mxu0 0.0
    %97 = vmatpush1.msra.mxu0 0.0
    %98 = vmatprep.subr.mxu0 0.0
    %99 = vmatpush1.msra.mxu0 0.0
    %100 = vmatprep.subr.mxu0 0.0
    %101 = vmatpush1.msra.mxu0 0.0
    %102 = vmatprep.subr.mxu0 0.0
    %103 = vmatpush1.msra.mxu0 0.0
    %104 = vmatprep.subr.mxu0 0.0
    %105 = vmatpush1.msra.mxu0 0.0
    %106 = vmatprep.mubr.f32.mxu0 0.0
    %107 = vmatmul.mubr.f32.gmra.mrb[0].mxu0 %v36
    %v108 = vpop.f32.mrb[0].mxu0
    %v109 = vadd.f32 0.0, %v108
    %v110 = vpop.f32.mrb[0].mxu0
    %111 = vdwg.mxu0
    %v112 = vld [vmem:[%s4] sm:$0xff]
    %v113 = vld [vmem:[%s7] sm:$0x1]
    %v115 = vlaneseq
    %v116 = vshrl.u32 %v115, 7
    %v117 = vsub.s32 0, %v116
    %v118 = vrot.slane %v113, %v117
    %vm120 = vcmask 64512
    %v122 = vsel %vm120, %v109, 0
    %124 = vmatprep.subr.mxu0 0.0
    %125 = vmatpush1.msra.mxu0 %v112
    %126 = vmatprep.subr.mxu0 0.0
    %127 = vmatpush1.msra.mxu0 0.0
    %128 = vmatprep.subr.mxu0 0.0
    %129 = vmatpush1.msra.mxu0 0.0
    %130 = vmatprep.subr.mxu0 0.0
    %131 = vmatpush1.msra.mxu0 0.0
    %132 = vmatprep.subr.mxu0 0.0
    %133 = vmatpush1.msra.mxu0 0.0
    %134 = vmatprep.subr.mxu0 0.0
    %135 = vmatpush1.msra.mxu0 0.0
    %136 = vmatprep.subr.mxu0 0.0
    %137 = vmatpush1.msra.mxu0 0.0
    %138 = vmatprep.subr.mxu0 0.0
    %139 = vmatpush1.msra.mxu0 0.0
    %140 = vmatprep.subr.mxu0 0.0
    %141 = vmatpush1.msra.mxu0 0.0
    %142 = vmatprep.subr.mxu0 0.0
    %143 = vmatpush1.msra.mxu0 0.0
    %144 = vmatprep.subr.mxu0 0.0
    %145 = vmatpush1.msra.mxu0 0.0
    %146 = vmatprep.subr.mxu0 0.0
    %147 = vmatpush1.msra.mxu0 0.0
    %148 = vmatprep.subr.mxu0 0.0
    %149 = vmatpush1.msra.mxu0 0.0
    %150 = vmatprep.subr.mxu0 0.0
    %151 = vmatpush1.msra.mxu0 0.0
    %152 = vmatprep.subr.mxu0 0.0
    %153 = vmatpush1.msra.mxu0 0.0
    %154 = vmatprep.subr.mxu0 0.0
    %155 = vmatpush1.msra.mxu0 0.0
    %156 = vmatprep.subr.mxu0 0.0
    %157 = vmatpush1.msra.mxu0 0.0
    %158 = vmatprep.subr.mxu0 0.0
    %159 = vmatpush1.msra.mxu0 0.0
    %160 = vmatprep.subr.mxu0 0.0
    %161 = vmatpush1.msra.mxu0 0.0
    %162 = vmatprep.subr.mxu0 0.0
    %163 = vmatpush1.msra.mxu0 0.0
    %164 = vmatprep.subr.mxu0 0.0
    %165 = vmatpush1.msra.mxu0 0.0
    %166 = vmatprep.subr.mxu0 0.0
    %167 = vmatpush1.msra.mxu0 0.0
    %168 = vmatprep.subr.mxu0 0.0
    %169 = vmatpush1.msra.mxu0 0.0
    %170 = vmatprep.subr.mxu0 0.0
    %171 = vmatpush1.msra.mxu0 0.0
    %172 = vmatprep.subr.mxu0 0.0
    %173 = vmatpush1.msra.mxu0 0.0
    %174 = vmatprep.subr.mxu0 0.0
    %175 = vmatpush1.msra.mxu0 0.0
    %176 = vmatprep.subr.mxu0 0.0
    %177 = vmatpush1.msra.mxu0 0.0
    %178 = vmatprep.subr.mxu0 0.0
    %179 = vmatpush1.msra.mxu0 0.0
    %180 = vmatprep.subr.mxu0 0.0
    %181 = vmatpush1.msra.mxu0 0.0
    %182 = vmatprep.subr.mxu0 0.0
    %183 = vmatpush1.msra.mxu0 0.0
    %184 = vmatprep.subr.mxu0 0.0
    %185 = vmatpush1.msra.mxu0 0.0
    %186 = vmatprep.subr.mxu0 0.0
    %187 = vmatpush1.msra.mxu0 0.0
    %188 = vmatprep.mubr.f32.mxu0 0.0
    %189 = vmatmul.mubr.f32.gmra.mrb[0].mxu0 %v122
    %v190 = vpop.f32.mrb[0].mxu0
    %v191 = vadd.f32 %v118, %v190
    %v192 = vpop.f32.mrb[0].mxu0
    %193 = vdwg.mxu0
    %v194 = vld [vmem:[%s0] sm:$0xff]
    %v195 = vld [vmem:[%s0 + $0x8] sm:$0xff]
    %v196 = vld [vmem:[%s0 + $0x10] sm:$0xff]
    %v197 = vld [vmem:[%s0 + $0x18] sm:$0xff]
    %v198 = vld [vmem:[%s0 + $0x20] sm:$0xff]
    %v199 = vld [vmem:[%s0 + $0x28] sm:$0xff]
    %v200 = vld [vmem:[%s0 + $0x30] sm:$0xff]
    %v201 = vld [vmem:[%s0 + $0x38] sm:$0xff]
    %v202 = vld [vmem:[%s3] sm:$0xff]
    %v204 = vsel %vm120, %v194, 0
    %v207 = vsel %vm120, %v195, 0
    %v210 = vsel %vm120, %v196, 0
    %v213 = vsel %vm120, %v197, 0
    %v216 = vsel %vm120, %v198, 0
    %v219 = vsel %vm120, %v199, 0
    %v222 = vsel %vm120, %v200, 0
    %v225 = vsel %vm120, %v201, 0
    %227 = vmatprep.subr.mxu0 0.0
    %228 = vmatpush1.msra.mxu0 %v202
    %229 = vmatprep.subr.mxu0 0.0
    %230 = vmatpush1.msra.mxu0 0.0
    %231 = vmatprep.subr.mxu0 0.0
    %232 = vmatpush1.msra.mxu0 0.0
    %233 = vmatprep.subr.mxu0 0.0
    %234 = vmatpush1.msra.mxu0 0.0
    %235 = vmatprep.subr.mxu0 0.0
    %236 = vmatpush1.msra.mxu0 0.0
    %237 = vmatprep.subr.mxu0 0.0
    %238 = vmatpush1.msra.mxu0 0.0
    %239 = vmatprep.subr.mxu0 0.0
    %240 = vmatpush1.msra.mxu0 0.0
    %241 = vmatprep.subr.mxu0 0.0
    %242 = vmatpush1.msra.mxu0 0.0
    %243 = vmatprep.subr.mxu0 0.0
    %244 = vmatpush1.msra.mxu0 0.0
    %245 = vmatprep.subr.mxu0 0.0
    %246 = vmatpush1.msra.mxu0 0.0
    %247 = vmatprep.subr.mxu0 0.0
    %248 = vmatpush1.msra.mxu0 0.0
    %249 = vmatprep.subr.mxu0 0.0
    %250 = vmatpush1.msra.mxu0 0.0
    %251 = vmatprep.subr.mxu0 0.0
    %252 = vmatpush1.msra.mxu0 0.0
    %253 = vmatprep.subr.mxu0 0.0
    %254 = vmatpush1.msra.mxu0 0.0
    %255 = vmatprep.subr.mxu0 0.0
    %256 = vmatpush1.msra.mxu0 0.0
    %257 = vmatprep.subr.mxu0 0.0
    %258 = vmatpush1.msra.mxu0 0.0
    %259 = vmatprep.subr.mxu0 0.0
    %260 = vmatpush1.msra.mxu0 0.0
    %261 = vmatprep.subr.mxu0 0.0
    %262 = vmatpush1.msra.mxu0 0.0
    %263 = vmatprep.subr.mxu0 0.0
    %264 = vmatpush1.msra.mxu0 0.0
    %265 = vmatprep.subr.mxu0 0.0
    %266 = vmatpush1.msra.mxu0 0.0
    %267 = vmatprep.subr.mxu0 0.0
    %268 = vmatpush1.msra.mxu0 0.0
    %269 = vmatprep.subr.mxu0 0.0
    %270 = vmatpush1.msra.mxu0 0.0
    %271 = vmatprep.subr.mxu0 0.0
    %272 = vmatpush1.msra.mxu0 0.0
    %273 = vmatprep.subr.mxu0 0.0
    %274 = vmatpush1.msra.mxu0 0.0
    %275 = vmatprep.subr.mxu0 0.0
    %276 = vmatpush1.msra.mxu0 0.0
    %277 = vmatprep.subr.mxu0 0.0
    %278 = vmatpush1.msra.mxu0 0.0
    %279 = vmatprep.subr.mxu0 0.0
    %280 = vmatpush1.msra.mxu0 0.0
    %281 = vmatprep.subr.mxu0 0.0
    %282 = vmatpush1.msra.mxu0 0.0
    %283 = vmatprep.subr.mxu0 0.0
    %284 = vmatpush1.msra.mxu0 0.0
    %285 = vmatprep.subr.mxu0 0.0
    %286 = vmatpush1.msra.mxu0 0.0
    %287 = vmatprep.subr.mxu0 0.0
    %288 = vmatpush1.msra.mxu0 0.0
    %289 = vmatprep.subr.mxu0 0.0
    %290 = vmatpush1.msra.mxu0 0.0
    %291 = vmatprep.mubr.f32.mxu0 0.0
    %292 = vmatmul.mubr.f32.gmra.mrb[0].mxu0 %v204
    %v293 = vpop.f32.mrb[0].mxu0
    %v294 = vadd.f32 0.0, %v293
    %v295 = vpop.f32.mrb[0].mxu0
    %296 = vmatprep.mubr.f32.mxu0 0.0
    %297 = vmatmul.mubr.f32.gmra.mrb[0].mxu0 %v207
    %v298 = vpop.f32.mrb[0].mxu0
    %v299 = vadd.f32 0.0, %v298
    %v300 = vpop.f32.mrb[0].mxu0
    %301 = vmatprep.mubr.f32.mxu0 0.0
    %302 = vmatmul.mubr.f32.gmra.mrb[0].mxu0 %v210
    %v303 = vpop.f32.mrb[0].mxu0
    %v304 = vadd.f32 0.0, %v303
    %v305 = vpop.f32.mrb[0].mxu0
    %306 = vmatprep.mubr.f32.mxu0 0.0
    %307 = vmatmul.mubr.f32.gmra.mrb[0].mxu0 %v213
    %v308 = vpop.f32.mrb[0].mxu0
    %v309 = vadd.f32 0.0, %v308
    %v310 = vpop.f32.mrb[0].mxu0
    %311 = vmatprep.mubr.f32.mxu0 0.0
    %312 = vmatmul.mubr.f32.gmra.mrb[0].mxu0 %v216
    %v313 = vpop.f32.mrb[0].mxu0
    %v314 = vadd.f32 0.0, %v313
    %v315 = vpop.f32.mrb[0].mxu0
    %316 = vmatprep.mubr.f32.mxu0 0.0
    %317 = vmatmul.mubr.f32.gmra.mrb[0].mxu0 %v219
    %v318 = vpop.f32.mrb[0].mxu0
    %v319 = vadd.f32 0.0, %v318
    %v320 = vpop.f32.mrb[0].mxu0
    %321 = vmatprep.mubr.f32.mxu0 0.0
    %322 = vmatmul.mubr.f32.gmra.mrb[0].mxu0 %v222
    %v323 = vpop.f32.mrb[0].mxu0
    %v324 = vadd.f32 0.0, %v323
    %v325 = vpop.f32.mrb[0].mxu0
    %326 = vmatprep.mubr.f32.mxu0 0.0
    %327 = vmatmul.mubr.f32.gmra.mrb[0].mxu0 %v225
    %v328 = vpop.f32.mrb[0].mxu0
    %v329 = vadd.f32 0.0, %v328
    %v330 = vpop.f32.mrb[0].mxu0
    %331 = vdwg.mxu0
    %332 = vst [vmem:[#allocation2] sm:$0xff] %v294
    %333 = vst [vmem:[#allocation2 + $0x8] sm:$0xff] %v299
    %334 = vst [vmem:[#allocation2 + $0x10] sm:$0xff] %v304
    %335 = vst [vmem:[#allocation2 + $0x18] sm:$0xff] %v309
    %336 = vst [vmem:[#allocation2 + $0x20] sm:$0xff] %v314
    %337 = vst [vmem:[#allocation2 + $0x28] sm:$0xff] %v319
    %338 = vst [vmem:[#allocation2 + $0x30] sm:$0xff] %v324
    %339 = vst [vmem:[#allocation2 + $0x38] sm:$0xff] %v329
    %v340 = vld [vmem:[%s5] sm:$0xff]
    %v341 = vld [vmem:[%s5 + $0x8] sm:$0xff]
    %v342 = vld [vmem:[%s5 + $0x10] sm:$0xff]
    %v343 = vld [vmem:[%s5 + $0x18] sm:$0xff]
    %v344 = vlaneseq
    %v345 = vand.u32 %v344, 127
    %vm346 = vcmp.ge.s32.totalorder %v345, 64
    %vm347 = vcmp.lt.s32.totalorder %v345, 96
    %vm348 = vmand %vm346, %vm347
    %v349 = vld [vmem:[#allocation2] sm:$0xff]
    %v350 = vadd.f32 %v349, %v191
    %vm351 = vcmask 261120
    %v353 = vsel %vm351, 0.0, 0
    %355 = vmatprep.subr.mxu0 0.0
    %356 = vmatpush1.msra.mxu0 %v340
    %357 = vmatprep.subr.mxu0 0.0
    %358 = vmatpush1.msra.mxu0 %v341
    %359 = vmatprep.subr.mxu0 0.0
    %360 = vmatpush1.msra.mxu0 %v342
    %361 = vmatprep.subr.mxu0 0.0
    %362 = vmatpush1.msra.mxu0 %v343
    %363 = vmatprep.subr.mxu0 0.0
    %364 = vmatpush1.msra.mxu0 0.0
    %365 = vmatprep.subr.mxu0 0.0
    %366 = vmatpush1.msra.mxu0 0.0
    %367 = vmatprep.subr.mxu0 0.0
    %368 = vmatpush1.msra.mxu0 0.0
    %369 = vmatprep.subr.mxu0 0.0
    %370 = vmatpush1.msra.mxu0 0.0
    %371 = vmatprep.subr.mxu0 0.0
    %372 = vmatpush1.msra.mxu0 0.0
    %373 = vmatprep.subr.mxu0 0.0
    %374 = vmatpush1.msra.mxu0 0.0
    %375 = vmatprep.subr.mxu0 0.0
    %376 = vmatpush1.msra.mxu0 0.0
    %377 = vmatprep.subr.mxu0 0.0
    %378 = vmatpush1.msra.mxu0 0.0
    %379 = vmatprep.subr.mxu0 0.0
    %380 = vmatpush1.msra.mxu0 0.0
    %381 = vmatprep.subr.mxu0 0.0
    %382 = vmatpush1.msra.mxu0 0.0
    %383 = vmatprep.subr.mxu0 0.0
    %384 = vmatpush1.msra.mxu0 0.0
    %385 = vmatprep.subr.mxu0 0.0
    %386 = vmatpush1.msra.mxu0 0.0
    %387 = vmatprep.subr.mxu0 0.0
    %388 = vmatpush1.msra.mxu0 0.0
    %389 = vmatprep.subr.mxu0 0.0
    %390 = vmatpush1.msra.mxu0 0.0
    %391 = vmatprep.subr.mxu0 0.0
    %392 = vmatpush1.msra.mxu0 0.0
    %393 = vmatprep.subr.mxu0 0.0
    %394 = vmatpush1.msra.mxu0 0.0
    %395 = vmatprep.subr.mxu0 0.0
    %396 = vmatpush1.msra.mxu0 0.0
    %397 = vmatprep.subr.mxu0 0.0
    %398 = vmatpush1.msra.mxu0 0.0
    %399 = vmatprep.subr.mxu0 0.0
    %400 = vmatpush1.msra.mxu0 0.0
    %401 = vmatprep.subr.mxu0 0.0
    %402 = vmatpush1.msra.mxu0 0.0
    %403 = vmatprep.subr.mxu0 0.0
    %404 = vmatpush1.msra.mxu0 0.0
    %405 = vmatprep.subr.mxu0 0.0
    %406 = vmatpush1.msra.mxu0 0.0
    %407 = vmatprep.subr.mxu0 0.0
    %408 = vmatpush1.msra.mxu0 0.0
    %409 = vmatprep.subr.mxu0 0.0
    %410 = vmatpush1.msra.mxu0 0.0
    %411 = vmatprep.subr.mxu0 0.0
    %412 = vmatpush1.msra.mxu0 0.0
    %413 = vmatprep.subr.mxu0 0.0
    %414 = vmatpush1.msra.mxu0 0.0
    %415 = vmatprep.subr.mxu0 0.0
    %416 = vmatpush1.msra.mxu0 0.0
    %417 = vmatprep.subr.mxu0 0.0
    %418 = vmatpush1.msra.mxu0 0.0
    %419 = vmatprep.mubr.f32.mxu0 0.0
    %420 = vmatmul.mubr.f32.gmra.mrb[0].mxu0 %v353
    %v421 = vpop.f32.mrb[0].mxu0
    %v422 = vadd.f32 0.0, %v421
    %v423 = vpop.f32.mrb[0].mxu0
    %424 = vdwg.mxu0
    %v425 = vadd.f32 %v350, %v422
    %v426 = vtanh.pop %v425
    %v427 = vxor.u32 %v425, 2147483648
    %v428 = vmul.f32 %v427, 1.442695
    %v429 = vpow.pop %v428
    %v430 = vadd.f32 %v429, 1.0
    %v431 = vrcp.pop %v430
    %v432 = vmul.f32 1.0, %v431
    %v433 = vsel %vm348, %v426, %v432
    %v434 = vmul.f32 %v433, 0.0
    %436 = vrot.lane.b32.xlu0 %v433, 64
    %v437 = vpop.permute.xlu0 %436
    %v439 = vmul.f32 %v433, %v437
    %441 = vrot.lane.b32.xlu0 %v439, 32
    %v442 = vpop.permute.xlu0 %441
    %v444 = vadd.f32 %v434, %v442
    %v445 = vtanh.pop %v444
    %447 = vrot.lane.b32.xlu0 %v445, 64
    %v448 = vpop.permute.xlu0 %447
    %v450 = vmul.f32 %v433, %v448
    %452 = vrot.lane.b32.xlu0 %v450, 32
    %v453 = vpop.permute.xlu0 %452
    %455 = vst.msk [vmem:[#allocation3] sm:$0xff] %vm351, %v453
    %s456 = scalar_lea.vmem [#allocation2], 8
    %v457 = vld [vmem:[%s456] sm:$0xff]
    %v458 = vadd.f32 %v457, %v191
    %v459 = vsel %vm351, %v453, 0
    %461 = vmatprep.subr.mxu0 0.0
    %462 = vmatpush1.msra.mxu0 %v340
    %463 = vmatprep.subr.mxu0 0.0
    %464 = vmatpush1.msra.mxu0 %v341
    %465 = vmatprep.subr.mxu0 0.0
    %466 = vmatpush1.msra.mxu0 %v342
    %467 = vmatprep.subr.mxu0 0.0
    %468 = vmatpush1.msra.mxu0 %v343
    %469 = vmatprep.subr.mxu0 0.0
    %470 = vmatpush1.msra.mxu0 0.0
    %471 = vmatprep.subr.mxu0 0.0
    %472 = vmatpush1.msra.mxu0 0.0
    %473 = vmatprep.subr.mxu0 0.0
    %474 = vmatpush1.msra.mxu0 0.0
    %475 = vmatprep.subr.mxu0 0.0
    %476 = vmatpush1.msra.mxu0 0.0
    %477 = vmatprep.subr.mxu0 0.0
    %478 = vmatpush1.msra.mxu0 0.0
    %479 = vmatprep.subr.mxu0 0.0
    %480 = vmatpush1.msra.mxu0 0.0
    %481 = vmatprep.subr.mxu0 0.0
    %482 = vmatpush1.msra.mxu0 0.0
    %483 = vmatprep.subr.mxu0 0.0
    %484 = vmatpush1.msra.mxu0 0.0
    %485 = vmatprep.subr.mxu0 0.0
    %486 = vmatpush1.msra.mxu0 0.0
    %487 = vmatprep.subr.mxu0 0.0
    %488 = vmatpush1.msra.mxu0 0.0
    %489 = vmatprep.subr.mxu0 0.0
    %490 = vmatpush1.msra.mxu0 0.0
    %491 = vmatprep.subr.mxu0 0.0
    %492 = vmatpush1.msra.mxu0 0.0
    %493 = vmatprep.subr.mxu0 0.0
    %494 = vmatpush1.msra.mxu0 0.0
    %495 = vmatprep.subr.mxu0 0.0
    %496 = vmatpush1.msra.mxu0 0.0
    %497 = vmatprep.subr.mxu0 0.0
    %498 = vmatpush1.msra.mxu0 0.0
    %499 = vmatprep.subr.mxu0 0.0
    %500 = vmatpush1.msra.mxu0 0.0
    %501 = vmatprep.subr.mxu0 0.0
    %502 = vmatpush1.msra.mxu0 0.0
    %503 = vmatprep.subr.mxu0 0.0
    %504 = vmatpush1.msra.mxu0 0.0
    %505 = vmatprep.subr.mxu0 0.0
    %506 = vmatpush1.msra.mxu0 0.0
    %507 = vmatprep.subr.mxu0 0.0
    %508 = vmatpush1.msra.mxu0 0.0
    %509 = vmatprep.subr.mxu0 0.0
    %510 = vmatpush1.msra.mxu0 0.0
    %511 = vmatprep.subr.mxu0 0.0
    %512 = vmatpush1.msra.mxu0 0.0
    %513 = vmatprep.subr.mxu0 0.0
    %514 = vmatpush1.msra.mxu0 0.0
    %515 = vmatprep.subr.mxu0 0.0
    %516 = vmatpush1.msra.mxu0 0.0
    %517 = vmatprep.subr.mxu0 0.0
    %518 = vmatpush1.msra.mxu0 0.0
    %519 = vmatprep.subr.mxu0 0.0
    %520 = vmatpush1.msra.mxu0 0.0
    %521 = vmatprep.subr.mxu0 0.0
    %522 = vmatpush1.msra.mxu0 0.0
    %523 = vmatprep.subr.mxu0 0.0
    %524 = vmatpush1.msra.mxu0 0.0
    %525 = vmatprep.mubr.f32.mxu0 0.0
    %526 = vmatmul.mubr.f32.gmra.mrb[0].mxu0 %v459
    %v527 = vpop.f32.mrb[0].mxu0
    %v528 = vadd.f32 0.0, %v527
    %v529 = vpop.f32.mrb[0].mxu0
    %530 = vdwg.mxu0
    %v531 = vadd.f32 %v458, %v528
    %v532 = vtanh.pop %v531
    %v533 = vxor.u32 %v531, 2147483648
    %v534 = vmul.f32 %v533, 1.442695
    %v535 = vpow.pop %v534
    %v536 = vadd.f32 %v535, 1.0
    %v537 = vrcp.pop %v536
    %v538 = vmul.f32 1.0, %v537
    %v539 = vsel %vm348, %v532, %v538
    %v540 = vmul.f32 %v539, %v444
    %542 = vrot.lane.b32.xlu0 %v539, 64
    %v543 = vpop.permute.xlu0 %542
    %v545 = vmul.f32 %v539, %v543
    %547 = vrot.lane.b32.xlu0 %v545, 32
    %v548 = vpop.permute.xlu0 %547
    %v550 = vadd.f32 %v540, %v548
    %v551 = vtanh.pop %v550
    %553 = vrot.lane.b32.xlu0 %v551, 64
    %v554 = vpop.permute.xlu0 %553
    %v556 = vmul.f32 %v539, %v554
    %558 = vrot.lane.b32.xlu0 %v556, 32
    %v559 = vpop.permute.xlu0 %558
    %s561 = scalar_lea.vmem [#allocation3], 8
    %562 = vst.msk [vmem:[%s561] sm:$0xff] %vm351, %v559
    %s563 = scalar_lea.vmem [#allocation2], 16
    %v564 = vld [vmem:[%s563] sm:$0xff]
    %v565 = vadd.f32 %v564, %v191
    %v566 = vsel %vm351, %v559, 0
    %568 = vmatprep.subr.mxu0 0.0
    %569 = vmatpush1.msra.mxu0 %v340
    %570 = vmatprep.subr.mxu0 0.0
    %571 = vmatpush1.msra.mxu0 %v341
    %572 = vmatprep.subr.mxu0 0.0
    %573 = vmatpush1.msra.mxu0 %v342
    %574 = vmatprep.subr.mxu0 0.0
    %575 = vmatpush1.msra.mxu0 %v343
    %576 = vmatprep.subr.mxu0 0.0
    %577 = vmatpush1.msra.mxu0 0.0
    %578 = vmatprep.subr.mxu0 0.0
    %579 = vmatpush1.msra.mxu0 0.0
    %580 = vmatprep.subr.mxu0 0.0
    %581 = vmatpush1.msra.mxu0 0.0
    %582 = vmatprep.subr.mxu0 0.0
    %583 = vmatpush1.msra.mxu0 0.0
    %584 = vmatprep.subr.mxu0 0.0
    %585 = vmatpush1.msra.mxu0 0.0
    %586 = vmatprep.subr.mxu0 0.0
    %587 = vmatpush1.msra.mxu0 0.0
    %588 = vmatprep.subr.mxu0 0.0
    %589 = vmatpush1.msra.mxu0 0.0
    %590 = vmatprep.subr.mxu0 0.0
    %591 = vmatpush1.msra.mxu0 0.0
    %592 = vmatprep.subr.mxu0 0.0
    %593 = vmatpush1.msra.mxu0 0.0
    %594 = vmatprep.subr.mxu0 0.0
    %595 = vmatpush1.msra.mxu0 0.0
    %596 = vmatprep.subr.mxu0 0.0
    %597 = vmatpush1.msra.mxu0 0.0
    %598 = vmatprep.subr.mxu0 0.0
    %599 = vmatpush1.msra.mxu0 0.0
    %600 = vmatprep.subr.mxu0 0.0
    %601 = vmatpush1.msra.mxu0 0.0
    %602 = vmatprep.subr.mxu0 0.0
    %603 = vmatpush1.msra.mxu0 0.0
    %604 = vmatprep.subr.mxu0 0.0
    %605 = vmatpush1.msra.mxu0 0.0
    %606 = vmatprep.subr.mxu0 0.0
    %607 = vmatpush1.msra.mxu0 0.0
    %608 = vmatprep.subr.mxu0 0.0
    %609 = vmatpush1.msra.mxu0 0.0
    %610 = vmatprep.subr.mxu0 0.0
    %611 = vmatpush1.msra.mxu0 0.0
    %612 = vmatprep.subr.mxu0 0.0
    %613 = vmatpush1.msra.mxu0 0.0
    %614 = vmatprep.subr.mxu0 0.0
    %615 = vmatpush1.msra.mxu0 0.0
    %616 = vmatprep.subr.mxu0 0.0
    %617 = vmatpush1.msra.mxu0 0.0
    %618 = vmatprep.subr.mxu0 0.0
    %619 = vmatpush1.msra.mxu0 0.0
    %620 = vmatprep.subr.mxu0 0.0
    %621 = vmatpush1.msra.mxu0 0.0
    %622 = vmatprep.subr.mxu0 0.0
    %623 = vmatpush1.msra.mxu0 0.0
    %624 = vmatprep.subr.mxu0 0.0
    %625 = vmatpush1.msra.mxu0 0.0
    %626 = vmatprep.subr.mxu0 0.0
    %627 = vmatpush1.msra.mxu0 0.0
    %628 = vmatprep.subr.mxu0 0.0
    %629 = vmatpush1.msra.mxu0 0.0
    %630 = vmatprep.subr.mxu0 0.0
    %631 = vmatpush1.msra.mxu0 0.0
    %632 = vmatprep.mubr.f32.mxu0 0.0
    %633 = vmatmul.mubr.f32.gmra.mrb[0].mxu0 %v566
    %v634 = vpop.f32.mrb[0].mxu0
    %v635 = vadd.f32 0.0, %v634
    %v636 = vpop.f32.mrb[0].mxu0
    %637 = vdwg.mxu0
    %v638 = vadd.f32 %v565, %v635
    %v639 = vtanh.pop %v638
    %v640 = vxor.u32 %v638, 2147483648
    %v641 = vmul.f32 %v640, 1.442695
    %v642 = vpow.pop %v641
    %v643 = vadd.f32 %v642, 1.0
    %v644 = vrcp.pop %v643
    %v645 = vmul.f32 1.0, %v644
    %v646 = vsel %vm348, %v639, %v645
    %v647 = vmul.f32 %v646, %v550
    %649 = vrot.lane.b32.xlu0 %v646, 64
    %v650 = vpop.permute.xlu0 %649
    %v652 = vmul.f32 %v646, %v650
    %654 = vrot.lane.b32.xlu0 %v652, 32
    %v655 = vpop.permute.xlu0 %654
    %v657 = vadd.f32 %v647, %v655
    %v658 = vtanh.pop %v657
    %660 = vrot.lane.b32.xlu0 %v658, 64
    %v661 = vpop.permute.xlu0 %660
    %v663 = vmul.f32 %v646, %v661
    %665 = vrot.lane.b32.xlu0 %v663, 32
    %v666 = vpop.permute.xlu0 %665
    %s668 = scalar_lea.vmem [#allocation3], 16
    %669 = vst.msk [vmem:[%s668] sm:$0xff] %vm351, %v666
    %s670 = scalar_lea.vmem [#allocation2], 24
    %v671 = vld [vmem:[%s670] sm:$0xff]
    %v672 = vadd.f32 %v671, %v191
    %v673 = vsel %vm351, %v666, 0
    %675 = vmatprep.subr.mxu0 0.0
    %676 = vmatpush1.msra.mxu0 %v340
    %677 = vmatprep.subr.mxu0 0.0
    %678 = vmatpush1.msra.mxu0 %v341
    %679 = vmatprep.subr.mxu0 0.0
    %680 = vmatpush1.msra.mxu0 %v342
    %681 = vmatprep.subr.mxu0 0.0
    %682 = vmatpush1.msra.mxu0 %v343
    %683 = vmatprep.subr.mxu0 0.0
    %684 = vmatpush1.msra.mxu0 0.0
    %685 = vmatprep.subr.mxu0 0.0
    %686 = vmatpush1.msra.mxu0 0.0
    %687 = vmatprep.subr.mxu0 0.0
    %688 = vmatpush1.msra.mxu0 0.0
    %689 = vmatprep.subr.mxu0 0.0
    %690 = vmatpush1.msra.mxu0 0.0
    %691 = vmatprep.subr.mxu0 0.0
    %692 = vmatpush1.msra.mxu0 0.0
    %693 = vmatprep.subr.mxu0 0.0
    %694 = vmatpush1.msra.mxu0 0.0
    %695 = vmatprep.subr.mxu0 0.0
    %696 = vmatpush1.msra.mxu0 0.0
    %697 = vmatprep.subr.mxu0 0.0
    %698 = vmatpush1.msra.mxu0 0.0
    %699 = vmatprep.subr.mxu0 0.0
    %700 = vmatpush1.msra.mxu0 0.0
    %701 = vmatprep.subr.mxu0 0.0
    %702 = vmatpush1.msra.mxu0 0.0
    %703 = vmatprep.subr.mxu0 0.0
    %704 = vmatpush1.msra.mxu0 0.0
    %705 = vmatprep.subr.mxu0 0.0
    %706 = vmatpush1.msra.mxu0 0.0
    %707 = vmatprep.subr.mxu0 0.0
    %708 = vmatpush1.msra.mxu0 0.0
    %709 = vmatprep.subr.mxu0 0.0
    %710 = vmatpush1.msra.mxu0 0.0
    %711 = vmatprep.subr.mxu0 0.0
    %712 = vmatpush1.msra.mxu0 0.0
    %713 = vmatprep.subr.mxu0 0.0
    %714 = vmatpush1.msra.mxu0 0.0
    %715 = vmatprep.subr.mxu0 0.0
    %716 = vmatpush1.msra.mxu0 0.0
    %717 = vmatprep.subr.mxu0 0.0
    %718 = vmatpush1.msra.mxu0 0.0
    %719 = vmatprep.subr.mxu0 0.0
    %720 = vmatpush1.msra.mxu0 0.0
    %721 = vmatprep.subr.mxu0 0.0
    %722 = vmatpush1.msra.mxu0 0.0
    %723 = vmatprep.subr.mxu0 0.0
    %724 = vmatpush1.msra.mxu0 0.0
    %725 = vmatprep.subr.mxu0 0.0
    %726 = vmatpush1.msra.mxu0 0.0
    %727 = vmatprep.subr.mxu0 0.0
    %728 = vmatpush1.msra.mxu0 0.0
    %729 = vmatprep.subr.mxu0 0.0
    %730 = vmatpush1.msra.mxu0 0.0
    %731 = vmatprep.subr.mxu0 0.0
    %732 = vmatpush1.msra.mxu0 0.0
    %733 = vmatprep.subr.mxu0 0.0
    %734 = vmatpush1.msra.mxu0 0.0
    %735 = vmatprep.subr.mxu0 0.0
    %736 = vmatpush1.msra.mxu0 0.0
    %737 = vmatprep.subr.mxu0 0.0
    %738 = vmatpush1.msra.mxu0 0.0
    %739 = vmatprep.mubr.f32.mxu0 0.0
    %740 = vmatmul.mubr.f32.gmra.mrb[0].mxu0 %v673
    %v741 = vpop.f32.mrb[0].mxu0
    %v742 = vadd.f32 0.0, %v741
    %v743 = vpop.f32.mrb[0].mxu0
    %744 = vdwg.mxu0
    %v745 = vadd.f32 %v672, %v742
    %v746 = vtanh.pop %v745
    %v747 = vxor.u32 %v745, 2147483648
    %v748 = vmul.f32 %v747, 1.442695
    %v749 = vpow.pop %v748
    %v750 = vadd.f32 %v749, 1.0
    %v751 = vrcp.pop %v750
    %v752 = vmul.f32 1.0, %v751
    %v753 = vsel %vm348, %v746, %v752
    %v754 = vmul.f32 %v753, %v657
    %756 = vrot.lane.b32.xlu0 %v753, 64
    %v757 = vpop.permute.xlu0 %756
    %v759 = vmul.f32 %v753, %v757
    %761 = vrot.lane.b32.xlu0 %v759, 32
    %v762 = vpop.permute.xlu0 %761
    %v764 = vadd.f32 %v754, %v762
    %v765 = vtanh.pop %v764
    %767 = vrot.lane.b32.xlu0 %v765, 64
    %v768 = vpop.permute.xlu0 %767
    %v770 = vmul.f32 %v753, %v768
    %772 = vrot.lane.b32.xlu0 %v770, 32
    %v773 = vpop.permute.xlu0 %772
    %s775 = scalar_lea.vmem [#allocation3], 24
    %776 = vst.msk [vmem:[%s775] sm:$0xff] %vm351, %v773
    %s777 = scalar_lea.vmem [#allocation2], 32
    %v778 = vld [vmem:[%s777] sm:$0xff]
    %v779 = vadd.f32 %v778, %v191
    %v780 = vsel %vm351, %v773, 0
    %782 = vmatprep.subr.mxu0 0.0
    %783 = vmatpush1.msra.mxu0 %v340
    %784 = vmatprep.subr.mxu0 0.0
    %785 = vmatpush1.msra.mxu0 %v341
    %786 = vmatprep.subr.mxu0 0.0
    %787 = vmatpush1.msra.mxu0 %v342
    %788 = vmatprep.subr.mxu0 0.0
    %789 = vmatpush1.msra.mxu0 %v343
    %790 = vmatprep.subr.mxu0 0.0
    %791 = vmatpush1.msra.mxu0 0.0
    %792 = vmatprep.subr.mxu0 0.0
    %793 = vmatpush1.msra.mxu0 0.0
    %794 = vmatprep.subr.mxu0 0.0
    %795 = vmatpush1.msra.mxu0 0.0
    %796 = vmatprep.subr.mxu0 0.0
    %797 = vmatpush1.msra.mxu0 0.0
    %798 = vmatprep.subr.mxu0 0.0
    %799 = vmatpush1.msra.mxu0 0.0
    %800 = vmatprep.subr.mxu0 0.0
    %801 = vmatpush1.msra.mxu0 0.0
    %802 = vmatprep.subr.mxu0 0.0
    %803 = vmatpush1.msra.mxu0 0.0
    %804 = vmatprep.subr.mxu0 0.0
    %805 = vmatpush1.msra.mxu0 0.0
    %806 = vmatprep.subr.mxu0 0.0
    %807 = vmatpush1.msra.mxu0 0.0
    %808 = vmatprep.subr.mxu0 0.0
    %809 = vmatpush1.msra.mxu0 0.0
    %810 = vmatprep.subr.mxu0 0.0
    %811 = vmatpush1.msra.mxu0 0.0
    %812 = vmatprep.subr.mxu0 0.0
    %813 = vmatpush1.msra.mxu0 0.0
    %814 = vmatprep.subr.mxu0 0.0
    %815 = vmatpush1.msra.mxu0 0.0
    %816 = vmatprep.subr.mxu0 0.0
    %817 = vmatpush1.msra.mxu0 0.0
    %818 = vmatprep.subr.mxu0 0.0
    %819 = vmatpush1.msra.mxu0 0.0
    %820 = vmatprep.subr.mxu0 0.0
    %821 = vmatpush1.msra.mxu0 0.0
    %822 = vmatprep.subr.mxu0 0.0
    %823 = vmatpush1.msra.mxu0 0.0
    %824 = vmatprep.subr.mxu0 0.0
    %825 = vmatpush1.msra.mxu0 0.0
    %826 = vmatprep.subr.mxu0 0.0
    %827 = vmatpush1.msra.mxu0 0.0
    %828 = vmatprep.subr.mxu0 0.0
    %829 = vmatpush1.msra.mxu0 0.0
    %830 = vmatprep.subr.mxu0 0.0
    %831 = vmatpush1.msra.mxu0 0.0
    %832 = vmatprep.subr.mxu0 0.0
    %833 = vmatpush1.msra.mxu0 0.0
    %834 = vmatprep.subr.mxu0 0.0
    %835 = vmatpush1.msra.mxu0 0.0
    %836 = vmatprep.subr.mxu0 0.0
    %837 = vmatpush1.msra.mxu0 0.0
    %838 = vmatprep.subr.mxu0 0.0
    %839 = vmatpush1.msra.mxu0 0.0
    %840 = vmatprep.subr.mxu0 0.0
    %841 = vmatpush1.msra.mxu0 0.0
    %842 = vmatprep.subr.mxu0 0.0
    %843 = vmatpush1.msra.mxu0 0.0
    %844 = vmatprep.subr.mxu0 0.0
    %845 = vmatpush1.msra.mxu0 0.0
    %846 = vmatprep.mubr.f32.mxu0 0.0
    %847 = vmatmul.mubr.f32.gmra.mrb[0].mxu0 %v780
    %v848 = vpop.f32.mrb[0].mxu0
    %v849 = vadd.f32 0.0, %v848
    %v850 = vpop.f32.mrb[0].mxu0
    %851 = vdwg.mxu0
    %v852 = vadd.f32 %v779, %v849
    %v853 = vtanh.pop %v852
    %v854 = vxor.u32 %v852, 2147483648
    %v855 = vmul.f32 %v854, 1.442695
    %v856 = vpow.pop %v855
    %v857 = vadd.f32 %v856, 1.0
    %v858 = vrcp.pop %v857
    %v859 = vmul.f32 1.0, %v858
    %v860 = vsel %vm348, %v853, %v859
    %v861 = vmul.f32 %v860, %v764
    %863 = vrot.lane.b32.xlu0 %v860, 64
    %v864 = vpop.permute.xlu0 %863
    %v866 = vmul.f32 %v860, %v864
    %868 = vrot.lane.b32.xlu0 %v866, 32
    %v869 = vpop.permute.xlu0 %868
    %v871 = vadd.f32 %v861, %v869
    %v872 = vtanh.pop %v871
    %874 = vrot.lane.b32.xlu0 %v872, 64
    %v875 = vpop.permute.xlu0 %874
    %v877 = vmul.f32 %v860, %v875
    %879 = vrot.lane.b32.xlu0 %v877, 32
    %v880 = vpop.permute.xlu0 %879
    %s882 = scalar_lea.vmem [#allocation3], 32
    %883 = vst.msk [vmem:[%s882] sm:$0xff] %vm351, %v880
    %s884 = scalar_lea.vmem [#allocation2], 40
    %v885 = vld [vmem:[%s884] sm:$0xff]
    %v886 = vadd.f32 %v885, %v191
    %v887 = vsel %vm351, %v880, 0
    %889 = vmatprep.subr.mxu0 0.0
    %890 = vmatpush1.msra.mxu0 %v340
    %891 = vmatprep.subr.mxu0 0.0
    %892 = vmatpush1.msra.mxu0 %v341
    %893 = vmatprep.subr.mxu0 0.0
    %894 = vmatpush1.msra.mxu0 %v342
    %895 = vmatprep.subr.mxu0 0.0
    %896 = vmatpush1.msra.mxu0 %v343
    %897 = vmatprep.subr.mxu0 0.0
    %898 = vmatpush1.msra.mxu0 0.0
    %899 = vmatprep.subr.mxu0 0.0
    %900 = vmatpush1.msra.mxu0 0.0
    %901 = vmatprep.subr.mxu0 0.0
    %902 = vmatpush1.msra.mxu0 0.0
    %903 = vmatprep.subr.mxu0 0.0
    %904 = vmatpush1.msra.mxu0 0.0
    %905 = vmatprep.subr.mxu0 0.0
    %906 = vmatpush1.msra.mxu0 0.0
    %907 = vmatprep.subr.mxu0 0.0
    %908 = vmatpush1.msra.mxu0 0.0
    %909 = vmatprep.subr.mxu0 0.0
    %910 = vmatpush1.msra.mxu0 0.0
    %911 = vmatprep.subr.mxu0 0.0
    %912 = vmatpush1.msra.mxu0 0.0
    %913 = vmatprep.subr.mxu0 0.0
    %914 = vmatpush1.msra.mxu0 0.0
    %915 = vmatprep.subr.mxu0 0.0
    %916 = vmatpush1.msra.mxu0 0.0
    %917 = vmatprep.subr.mxu0 0.0
    %918 = vmatpush1.msra.mxu0 0.0
    %919 = vmatprep.subr.mxu0 0.0
    %920 = vmatpush1.msra.mxu0 0.0
    %921 = vmatprep.subr.mxu0 0.0
    %922 = vmatpush1.msra.mxu0 0.0
    %923 = vmatprep.subr.mxu0 0.0
    %924 = vmatpush1.msra.mxu0 0.0
    %925 = vmatprep.subr.mxu0 0.0
    %926 = vmatpush1.msra.mxu0 0.0
    %927 = vmatprep.subr.mxu0 0.0
    %928 = vmatpush1.msra.mxu0 0.0
    %929 = vmatprep.subr.mxu0 0.0
    %930 = vmatpush1.msra.mxu0 0.0
    %931 = vmatprep.subr.mxu0 0.0
    %932 = vmatpush1.msra.mxu0 0.0
    %933 = vmatprep.subr.mxu0 0.0
    %934 = vmatpush1.msra.mxu0 0.0
    %935 = vmatprep.subr.mxu0 0.0
    %936 = vmatpush1.msra.mxu0 0.0
    %937 = vmatprep.subr.mxu0 0.0
    %938 = vmatpush1.msra.mxu0 0.0
    %939 = vmatprep.subr.mxu0 0.0
    %940 = vmatpush1.msra.mxu0 0.0
    %941 = vmatprep.subr.mxu0 0.0
    %942 = vmatpush1.msra.mxu0 0.0
    %943 = vmatprep.subr.mxu0 0.0
    %944 = vmatpush1.msra.mxu0 0.0
    %945 = vmatprep.subr.mxu0 0.0
    %946 = vmatpush1.msra.mxu0 0.0
    %947 = vmatprep.subr.mxu0 0.0
    %948 = vmatpush1.msra.mxu0 0.0
    %949 = vmatprep.subr.mxu0 0.0
    %950 = vmatpush1.msra.mxu0 0.0
    %951 = vmatprep.subr.mxu0 0.0
    %952 = vmatpush1.msra.mxu0 0.0
    %953 = vmatprep.mubr.f32.mxu0 0.0
    %954 = vmatmul.mubr.f32.gmra.mrb[0].mxu0 %v887
    %v955 = vpop.f32.mrb[0].mxu0
    %v956 = vadd.f32 0.0, %v955
    %v957 = vpop.f32.mrb[0].mxu0
    %958 = vdwg.mxu0
    %v959 = vadd.f32 %v886, %v956
    %v960 = vtanh.pop %v959
    %v961 = vxor.u32 %v959, 2147483648
    %v962 = vmul.f32 %v961, 1.442695
    %v963 = vpow.pop %v962
    %v964 = vadd.f32 %v963, 1.0
    %v965 = vrcp.pop %v964
    %v966 = vmul.f32 1.0, %v965
    %v967 = vsel %vm348, %v960, %v966
    %v968 = vmul.f32 %v967, %v871
    %970 = vrot.lane.b32.xlu0 %v967, 64
    %v971 = vpop.permute.xlu0 %970
    %v973 = vmul.f32 %v967, %v971
    %975 = vrot.lane.b32.xlu0 %v973, 32
    %v976 = vpop.permute.xlu0 %975
    %v978 = vadd.f32 %v968, %v976
    %v979 = vtanh.pop %v978
    %981 = vrot.lane.b32.xlu0 %v979, 64
    %v982 = vpop.permute.xlu0 %981
    %v984 = vmul.f32 %v967, %v982
    %986 = vrot.lane.b32.xlu0 %v984, 32
    %v987 = vpop.permute.xlu0 %986
    %s989 = scalar_lea.vmem [#allocation3], 40
    %990 = vst.msk [vmem:[%s989] sm:$0xff] %vm351, %v987
    %s991 = scalar_lea.vmem [#allocation2], 48
    %v992 = vld [vmem:[%s991] sm:$0xff]
    %v993 = vadd.f32 %v992, %v191
    %v994 = vsel %vm351, %v987, 0
    %996 = vmatprep.subr.mxu0 0.0
    %997 = vmatpush1.msra.mxu0 %v340
    %998 = vmatprep.subr.mxu0 0.0
    %999 = vmatpush1.msra.mxu0 %v341
    %1000 = vmatprep.subr.mxu0 0.0
    %1001 = vmatpush1.msra.mxu0 %v342
    %1002 = vmatprep.subr.mxu0 0.0
    %1003 = vmatpush1.msra.mxu0 %v343
    %1004 = vmatprep.subr.mxu0 0.0
    %1005 = vmatpush1.msra.mxu0 0.0
    %1006 = vmatprep.subr.mxu0 0.0
    %1007 = vmatpush1.msra.mxu0 0.0
    %1008 = vmatprep.subr.mxu0 0.0
    %1009 = vmatpush1.msra.mxu0 0.0
    %1010 = vmatprep.subr.mxu0 0.0
    %1011 = vmatpush1.msra.mxu0 0.0
    %1012 = vmatprep.subr.mxu0 0.0
    %1013 = vmatpush1.msra.mxu0 0.0
    %1014 = vmatprep.subr.mxu0 0.0
    %1015 = vmatpush1.msra.mxu0 0.0
    %1016 = vmatprep.subr.mxu0 0.0
    %1017 = vmatpush1.msra.mxu0 0.0
    %1018 = vmatprep.subr.mxu0 0.0
    %1019 = vmatpush1.msra.mxu0 0.0
    %1020 = vmatprep.subr.mxu0 0.0
    %1021 = vmatpush1.msra.mxu0 0.0
    %1022 = vmatprep.subr.mxu0 0.0
    %1023 = vmatpush1.msra.mxu0 0.0
    %1024 = vmatprep.subr.mxu0 0.0
    %1025 = vmatpush1.msra.mxu0 0.0
    %1026 = vmatprep.subr.mxu0 0.0
    %1027 = vmatpush1.msra.mxu0 0.0
    %1028 = vmatprep.subr.mxu0 0.0
    %1029 = vmatpush1.msra.mxu0 0.0
    %1030 = vmatprep.subr.mxu0 0.0
    %1031 = vmatpush1.msra.mxu0 0.0
    %1032 = vmatprep.subr.mxu0 0.0
    %1033 = vmatpush1.msra.mxu0 0.0
    %1034 = vmatprep.subr.mxu0 0.0
    %1035 = vmatpush1.msra.mxu0 0.0
    %1036 = vmatprep.subr.mxu0 0.0
    %1037 = vmatpush1.msra.mxu0 0.0
    %1038 = vmatprep.subr.mxu0 0.0
    %1039 = vmatpush1.msra.mxu0 0.0
    %1040 = vmatprep.subr.mxu0 0.0
    %1041 = vmatpush1.msra.mxu0 0.0
    %1042 = vmatprep.subr.mxu0 0.0
    %1043 = vmatpush1.msra.mxu0 0.0
    %1044 = vmatprep.subr.mxu0 0.0
    %1045 = vmatpush1.msra.mxu0 0.0
    %1046 = vmatprep.subr.mxu0 0.0
    %1047 = vmatpush1.msra.mxu0 0.0
    %1048 = vmatprep.subr.mxu0 0.0
    %1049 = vmatpush1.msra.mxu0 0.0
    %1050 = vmatprep.subr.mxu0 0.0
    %1051 = vmatpush1.msra.mxu0 0.0
    %1052 = vmatprep.subr.mxu0 0.0
    %1053 = vmatpush1.msra.mxu0 0.0
    %1054 = vmatprep.subr.mxu0 0.0
    %1055 = vmatpush1.msra.mxu0 0.0
    %1056 = vmatprep.subr.mxu0 0.0
    %1057 = vmatpush1.msra.mxu0 0.0
    %1058 = vmatprep.subr.mxu0 0.0
    %1059 = vmatpush1.msra.mxu0 0.0
    %1060 = vmatprep.mubr.f32.mxu0 0.0
    %1061 = vmatmul.mubr.f32.gmra.mrb[0].mxu0 %v994
    %v1062 = vpop.f32.mrb[0].mxu0
    %v1063 = vadd.f32 0.0, %v1062
    %v1064 = vpop.f32.mrb[0].mxu0
    %1065 = vdwg.mxu0
    %v1066 = vadd.f32 %v993, %v1063
    %v1067 = vtanh.pop %v1066
    %v1068 = vxor.u32 %v1066, 2147483648
    %v1069 = vmul.f32 %v1068, 1.442695
    %v1070 = vpow.pop %v1069
    %v1071 = vadd.f32 %v1070, 1.0
    %v1072 = vrcp.pop %v1071
    %v1073 = vmul.f32 1.0, %v1072
    %v1074 = vsel %vm348, %v1067, %v1073
    %v1075 = vmul.f32 %v1074, %v978
    %1077 = vrot.lane.b32.xlu0 %v1074, 64
    %v1078 = vpop.permute.xlu0 %1077
    %v1080 = vmul.f32 %v1074, %v1078
    %1082 = vrot.lane.b32.xlu0 %v1080, 32
    %v1083 = vpop.permute.xlu0 %1082
    %v1085 = vadd.f32 %v1075, %v1083
    %v1086 = vtanh.pop %v1085
    %1088 = vrot.lane.b32.xlu0 %v1086, 64
    %v1089 = vpop.permute.xlu0 %1088
    %v1091 = vmul.f32 %v1074, %v1089
    %1093 = vrot.lane.b32.xlu0 %v1091, 32
    %v1094 = vpop.permute.xlu0 %1093
    %s1096 = scalar_lea.vmem [#allocation3], 48
    %1097 = vst.msk [vmem:[%s1096] sm:$0xff] %vm351, %v1094
    %s1098 = scalar_lea.vmem [#allocation2], 56
    %v1099 = vld [vmem:[%s1098] sm:$0xff]
    %v1100 = vadd.f32 %v1099, %v191
    %v1101 = vsel %vm351, %v1094, 0
    %1103 = vmatprep.subr.mxu0 0.0
    %1104 = vmatpush1.msra.mxu0 %v340
    %1105 = vmatprep.subr.mxu0 0.0
    %1106 = vmatpush1.msra.mxu0 %v341
    %1107 = vmatprep.subr.mxu0 0.0
    %1108 = vmatpush1.msra.mxu0 %v342
    %1109 = vmatprep.subr.mxu0 0.0
    %1110 = vmatpush1.msra.mxu0 %v343
    %1111 = vmatprep.subr.mxu0 0.0
    %1112 = vmatpush1.msra.mxu0 0.0
    %1113 = vmatprep.subr.mxu0 0.0
    %1114 = vmatpush1.msra.mxu0 0.0
    %1115 = vmatprep.subr.mxu0 0.0
    %1116 = vmatpush1.msra.mxu0 0.0
    %1117 = vmatprep.subr.mxu0 0.0
    %1118 = vmatpush1.msra.mxu0 0.0
    %1119 = vmatprep.subr.mxu0 0.0
    %1120 = vmatpush1.msra.mxu0 0.0
    %1121 = vmatprep.subr.mxu0 0.0
    %1122 = vmatpush1.msra.mxu0 0.0
    %1123 = vmatprep.subr.mxu0 0.0
    %1124 = vmatpush1.msra.mxu0 0.0
    %1125 = vmatprep.subr.mxu0 0.0
    %1126 = vmatpush1.msra.mxu0 0.0
    %1127 = vmatprep.subr.mxu0 0.0
    %1128 = vmatpush1.msra.mxu0 0.0
    %1129 = vmatprep.subr.mxu0 0.0
    %1130 = vmatpush1.msra.mxu0 0.0
    %1131 = vmatprep.subr.mxu0 0.0
    %1132 = vmatpush1.msra.mxu0 0.0
    %1133 = vmatprep.subr.mxu0 0.0
    %1134 = vmatpush1.msra.mxu0 0.0
    %1135 = vmatprep.subr.mxu0 0.0
    %1136 = vmatpush1.msra.mxu0 0.0
    %1137 = vmatprep.subr.mxu0 0.0
    %1138 = vmatpush1.msra.mxu0 0.0
    %1139 = vmatprep.subr.mxu0 0.0
    %1140 = vmatpush1.msra.mxu0 0.0
    %1141 = vmatprep.subr.mxu0 0.0
    %1142 = vmatpush1.msra.mxu0 0.0
    %1143 = vmatprep.subr.mxu0 0.0
    %1144 = vmatpush1.msra.mxu0 0.0
    %1145 = vmatprep.subr.mxu0 0.0
    %1146 = vmatpush1.msra.mxu0 0.0
    %1147 = vmatprep.subr.mxu0 0.0
    %1148 = vmatpush1.msra.mxu0 0.0
    %1149 = vmatprep.subr.mxu0 0.0
    %1150 = vmatpush1.msra.mxu0 0.0
    %1151 = vmatprep.subr.mxu0 0.0
    %1152 = vmatpush1.msra.mxu0 0.0
    %1153 = vmatprep.subr.mxu0 0.0
    %1154 = vmatpush1.msra.mxu0 0.0
    %1155 = vmatprep.subr.mxu0 0.0
    %1156 = vmatpush1.msra.mxu0 0.0
    %1157 = vmatprep.subr.mxu0 0.0
    %1158 = vmatpush1.msra.mxu0 0.0
    %1159 = vmatprep.subr.mxu0 0.0
    %1160 = vmatpush1.msra.mxu0 0.0
    %1161 = vmatprep.subr.mxu0 0.0
    %1162 = vmatpush1.msra.mxu0 0.0
    %1163 = vmatprep.subr.mxu0 0.0
    %1164 = vmatpush1.msra.mxu0 0.0
    %1165 = vmatprep.subr.mxu0 0.0
    %1166 = vmatpush1.msra.mxu0 0.0
    %1167 = vmatprep.mubr.f32.mxu0 0.0
    %1168 = vmatmul.mubr.f32.gmra.mrb[0].mxu0 %v1101
    %v1169 = vpop.f32.mrb[0].mxu0
    %v1170 = vadd.f32 0.0, %v1169
    %v1171 = vpop.f32.mrb[0].mxu0
    %1172 = vdwg.mxu0
    %v1173 = vadd.f32 %v1100, %v1170
    %v1174 = vtanh.pop %v1173
    %v1175 = vxor.u32 %v1173, 2147483648
    %v1176 = vmul.f32 %v1175, 1.442695
    %v1177 = vpow.pop %v1176
    %v1178 = vadd.f32 %v1177, 1.0
    %v1179 = vrcp.pop %v1178
    %v1180 = vmul.f32 1.0, %v1179
    %v1181 = vsel %vm348, %v1174, %v1180
    %v1182 = vmul.f32 %v1181, %v1085
    %1184 = vrot.lane.b32.xlu0 %v1181, 64
    %v1185 = vpop.permute.xlu0 %1184
    %v1187 = vmul.f32 %v1181, %v1185
    %1189 = vrot.lane.b32.xlu0 %v1187, 32
    %v1190 = vpop.permute.xlu0 %1189
    %v1192 = vadd.f32 %v1182, %v1190
    %v1193 = vtanh.pop %v1192
    %1195 = vrot.lane.b32.xlu0 %v1193, 64
    %v1196 = vpop.permute.xlu0 %1195
    %v1198 = vmul.f32 %v1181, %v1196
    %1200 = vrot.lane.b32.xlu0 %v1198, 32
    %v1201 = vpop.permute.xlu0 %1200
    %s1203 = scalar_lea.vmem [#allocation3], 56
    %1204 = vst.msk [vmem:[%s1203] sm:$0xff] %vm351, %v1201
    %v1205 = vsel %vm351, %v1201, %v1192
    %vm1206 = vcmask 523264
    %1207 = vst.msk [vmem:[#allocation4] sm:$0xff] %vm1206, %v1205
    %v1208 = vld [vmem:[#allocation3] sm:$0xff]
    %v1209 = vld [vmem:[#allocation3 + $0x8] sm:$0xff]
    %v1210 = vld [vmem:[#allocation3 + $0x10] sm:$0xff]
    %v1211 = vld [vmem:[#allocation3 + $0x18] sm:$0xff]
    %v1212 = vld [vmem:[#allocation3 + $0x20] sm:$0xff]
    %v1213 = vld [vmem:[#allocation3 + $0x28] sm:$0xff]
    %v1214 = vld [vmem:[#allocation3 + $0x30] sm:$0xff]
    %v1215 = vld [vmem:[#allocation3 + $0x38] sm:$0xff]
    %v1216 = vld [vmem:[%s6] sm:$0xff]
    %v1217 = vld [vmem:[%s6 + $0x8] sm:$0xff]
    %v1218 = vld [vmem:[%s6 + $0x10] sm:$0xff]
    %v1219 = vld [vmem:[%s6 + $0x18] sm:$0xff]
    %v1220 = vld [vmem:[%s7 + $0x1] sm:$0x1]
    %v1222 = vlaneseq
    %v1223 = vshrl.u32 %v1222, 7
    %v1224 = vsub.s32 0, %v1223
    %v1225 = vrot.slane %v1220, %v1224
    %v1228 = vsel %vm351, %v1208, 0
    %v1231 = vsel %vm351, %v1209, 0
    %v1234 = vsel %vm351, %v1210, 0
    %v1237 = vsel %vm351, %v1211, 0
    %v1240 = vsel %vm351, %v1212, 0
    %v1243 = vsel %vm351, %v1213, 0
    %v1246 = vsel %vm351, %v1214, 0
    %v1249 = vsel %vm351, %v1215, 0
    %1251 = vmatprep.subr.mxu0 0.0
    %1252 = vmatpush1.msra.mxu0 %v1216
    %1253 = vmatprep.subr.mxu0 0.0
    %1254 = vmatpush1.msra.mxu0 %v1217
    %1255 = vmatprep.subr.mxu0 0.0
    %1256 = vmatpush1.msra.mxu0 %v1218
    %1257 = vmatprep.subr.mxu0 0.0
    %1258 = vmatpush1.msra.mxu0 %v1219
    %1259 = vmatprep.subr.mxu0 0.0
    %1260 = vmatpush1.msra.mxu0 0.0
    %1261 = vmatprep.subr.mxu0 0.0
    %1262 = vmatpush1.msra.mxu0 0.0
    %1263 = vmatprep.subr.mxu0 0.0
    %1264 = vmatpush1.msra.mxu0 0.0
    %1265 = vmatprep.subr.mxu0 0.0
    %1266 = vmatpush1.msra.mxu0 0.0
    %1267 = vmatprep.subr.mxu0 0.0
    %1268 = vmatpush1.msra.mxu0 0.0
    %1269 = vmatprep.subr.mxu0 0.0
    %1270 = vmatpush1.msra.mxu0 0.0
    %1271 = vmatprep.subr.mxu0 0.0
    %1272 = vmatpush1.msra.mxu0 0.0
    %1273 = vmatprep.subr.mxu0 0.0
    %1274 = vmatpush1.msra.mxu0 0.0
    %1275 = vmatprep.subr.mxu0 0.0
    %1276 = vmatpush1.msra.mxu0 0.0
    %1277 = vmatprep.subr.mxu0 0.0
    %1278 = vmatpush1.msra.mxu0 0.0
    %1279 = vmatprep.subr.mxu0 0.0
    %1280 = vmatpush1.msra.mxu0 0.0
    %1281 = vmatprep.subr.mxu0 0.0
    %1282 = vmatpush1.msra.mxu0 0.0
    %1283 = vmatprep.subr.mxu0 0.0
    %1284 = vmatpush1.msra.mxu0 0.0
    %1285 = vmatprep.subr.mxu0 0.0
    %1286 = vmatpush1.msra.mxu0 0.0
    %1287 = vmatprep.subr.mxu0 0.0
    %1288 = vmatpush1.msra.mxu0 0.0
    %1289 = vmatprep.subr.mxu0 0.0
    %1290 = vmatpush1.msra.mxu0 0.0
    %1291 = vmatprep.subr.mxu0 0.0
    %1292 = vmatpush1.msra.mxu0 0.0
    %1293 = vmatprep.subr.mxu0 0.0
    %1294 = vmatpush1.msra.mxu0 0.0
    %1295 = vmatprep.subr.mxu0 0.0
    %1296 = vmatpush1.msra.mxu0 0.0
    %1297 = vmatprep.subr.mxu0 0.0
    %1298 = vmatpush1.msra.mxu0 0.0
    %1299 = vmatprep.subr.mxu0 0.0
    %1300 = vmatpush1.msra.mxu0 0.0
    %1301 = vmatprep.subr.mxu0 0.0
    %1302 = vmatpush1.msra.mxu0 0.0
    %1303 = vmatprep.subr.mxu0 0.0
    %1304 = vmatpush1.msra.mxu0 0.0
    %1305 = vmatprep.subr.mxu0 0.0
    %1306 = vmatpush1.msra.mxu0 0.0
    %1307 = vmatprep.subr.mxu0 0.0
    %1308 = vmatpush1.msra.mxu0 0.0
    %1309 = vmatprep.subr.mxu0 0.0
    %1310 = vmatpush1.msra.mxu0 0.0
    %1311 = vmatprep.subr.mxu0 0.0
    %1312 = vmatpush1.msra.mxu0 0.0
    %1313 = vmatprep.subr.mxu0 0.0
    %1314 = vmatpush1.msra.mxu0 0.0
    %1315 = vmatprep.mubr.f32.mxu0 0.0
    %1316 = vmatmul.mubr.f32.gmra.mrb[0].mxu0 %v1228
    %v1317 = vpop.f32.mrb[0].mxu0
    %v1318 = vadd.f32 %v1225, %v1317
    %v1319 = vpop.f32.mrb[0].mxu0
    %1320 = vmatprep.mubr.f32.mxu0 0.0
    %1321 = vmatmul.mubr.f32.gmra.mrb[0].mxu0 %v1231
    %v1322 = vpop.f32.mrb[0].mxu0
    %v1323 = vadd.f32 %v1225, %v1322
    %v1324 = vpop.f32.mrb[0].mxu0
    %1325 = vmatprep.mubr.f32.mxu0 0.0
    %1326 = vmatmul.mubr.f32.gmra.mrb[0].mxu0 %v1234
    %v1327 = vpop.f32.mrb[0].mxu0
    %v1328 = vadd.f32 %v1225, %v1327
    %v1329 = vpop.f32.mrb[0].mxu0
    %1330 = vmatprep.mubr.f32.mxu0 0.0
    %1331 = vmatmul.mubr.f32.gmra.mrb[0].mxu0 %v1237
    %v1332 = vpop.f32.mrb[0].mxu0
    %v1333 = vadd.f32 %v1225, %v1332
    %v1334 = vpop.f32.mrb[0].mxu0
    %1335 = vmatprep.mubr.f32.mxu0 0.0
    %1336 = vmatmul.mubr.f32.gmra.mrb[0].mxu0 %v1240
    %v1337 = vpop.f32.mrb[0].mxu0
    %v1338 = vadd.f32 %v1225, %v1337
    %v1339 = vpop.f32.mrb[0].mxu0
    %1340 = vmatprep.mubr.f32.mxu0 0.0
    %1341 = vmatmul.mubr.f32.gmra.mrb[0].mxu0 %v1243
    %v1342 = vpop.f32.mrb[0].mxu0
    %v1343 = vadd.f32 %v1225, %v1342
    %v1344 = vpop.f32.mrb[0].mxu0
    %1345 = vmatprep.mubr.f32.mxu0 0.0
    %1346 = vmatmul.mubr.f32.gmra.mrb[0].mxu0 %v1246
    %v1347 = vpop.f32.mrb[0].mxu0
    %v1348 = vadd.f32 %v1225, %v1347
    %v1349 = vpop.f32.mrb[0].mxu0
    %1350 = vmatprep.mubr.f32.mxu0 0.0
    %1351 = vmatmul.mubr.f32.gmra.mrb[0].mxu0 %v1249
    %v1352 = vpop.f32.mrb[0].mxu0
    %v1353 = vadd.f32 %v1225, %v1352
    %v1354 = vpop.f32.mrb[0].mxu0
    %1355 = vdwg.mxu0
    %vm1356 = vcmask 130048
    %1357 = vst.msk [vmem:[%s8] sm:$0xff] %vm1356, %v1318
    %1358 = vst.msk [vmem:[%s8 + $0x8] sm:$0xff] %vm1356, %v1323
    %1359 = vst.msk [vmem:[%s8 + $0x10] sm:$0xff] %vm1356, %v1328
    %1360 = vst.msk [vmem:[%s8 + $0x18] sm:$0xff] %vm1356, %v1333
    %1361 = vst.msk [vmem:[%s8 + $0x20] sm:$0xff] %vm1356, %v1338
    %1362 = vst.msk [vmem:[%s8 + $0x28] sm:$0xff] %vm1356, %v1343
    %1363 = vst.msk [vmem:[%s8 + $0x30] sm:$0xff] %vm1356, %v1348
    %1364 = vst.msk [vmem:[%s8 + $0x38] sm:$0xff] %vm1356, %v1353
    // Predicated region
    $region34: #{tpu_custom_call.1} parent=1 // pred_check
      _
    $region35: #{tpu_custom_call.1} parent=1 // pred_check_branch
      %1366 = sbr.rel (0) target = $region37
    $region36: #{tpu_custom_call.1} parent=1 // pred_region
      _
    $region37: #{tpu_custom_call.1} parent=1 // pred_fallthru
      _
    // Predicated region
    $region38: #{tpu_custom_call.1} parent=1 // pred_check
      _
    $region39: #{tpu_custom_call.1} parent=1 // pred_check_branch
      %1368 = sbr.rel (0) target = $region41
    $region40: #{tpu_custom_call.1} parent=1 // pred_region
      %s1370 = ssub.s32 128, 128
      %1371 = vsyncadd [#allocation5], %s1370
      %s1373 = sshll.u32 [#allocation4], 4
      %s1374 = int_to_ptr.vmem [resolvable:$true] %s1373
      %1376 = dma.vmem_to_hbm [thread:$0]  %s1374, 128, %s9, [#allocation5]
    $region41: #{tpu_custom_call.1} parent=1 // pred_fallthru
      _
    // Predicated region
    $region42: #{tpu_custom_call.1} parent=1 // pred_check
      _
    $region43: #{tpu_custom_call.1} parent=1 // pred_check_branch
      %1378 = sbr.rel (0) target = $region45
    $region44: #{tpu_custom_call.1} parent=1 // pred_region
      _
    $region45: #{tpu_custom_call.1} parent=1 // pred_fallthru
      _
    // Predicated region
    $region46: #{tpu_custom_call.1} parent=1 // pred_check
      _
    $region47: #{tpu_custom_call.1} parent=1 // pred_check_branch
      %1380 = sbr.rel (0) target = $region49
    $region48: #{tpu_custom_call.1} parent=1 // pred_region
      %1381 = dma.done [#allocation5], 128
    $region49: #{tpu_custom_call.1} parent=1 // pred_fallthru
      _
    %1382 = vsyncpa [#allocation5], 1

</llo_original>
